<compile_context>
chip_gen: v5e
topology: v5e:2x2
jax: 0.10.0
libtpu: 0.0.40
codegen_flags: <defaults>
</compile_context>

<pallas_src>
import functools

import jax
import jax.numpy as jnp
from jax.experimental import pallas as pl
from jax.experimental.pallas import tpu as pltpu


# ----------------------------- fused kernel ---------------------------------
def fused_encoder_decoder_kernel(x_ref, w_ref, v_ref, o_ref, *,
                                 n_batch, seq_len, lpad, layers):
    """x_ref: (N, Cin, Lpad). All 6 layers computed in VMEM on a (C, N*Lpad)
    lane-dense token axis. `layers` = 6x (row_offset, out_pad, in_pad)."""
    t_total = n_batch * lpad
    has_pad = (lpad != seq_len)
    inv_n = 1.0 / float(n_batch * seq_len)          # real token count (BN stats)

    lane = jax.lax.broadcasted_iota(jnp.int32, (1, t_total), 1)
    in_pos = lane % lpad                            # position inside its sequence
    not_first = (in_pos != 0).astype(jnp.float32)   # float seam masks (VPU mul)
    not_last = (in_pos != (seq_len - 1)).astype(jnp.float32)
    valid = (in_pos < seq_len).astype(jnp.float32) if has_pad else None

    # (N, Cin, Lpad) -> (Cin, N*Lpad): lane-aligned concat of per-batch slabs,
    # no wrapper-side transpose / HBM round trip.
    # TODO(synk): for large N, write the slabs into a VMEM scratch in a loop.
    h = jnp.concatenate([x_ref[b] for b in range(n_batch)], axis=1)

    def conv3(x, lidx):
        # same-padded k=3 conv = three accumulating MXU matmuls (no tap concat).
        row, op, ip = layers[lidx]
        x_m1 = pltpu.roll(x, 1, axis=1) * not_first           # x[t-1], seam-masked
        x_p1 = pltpu.roll(x, t_total - 1, axis=1) * not_last  # x[t+1], seam-masked
        y = jnp.dot(w_ref[row + op: row + 2 * op, :ip], x,
                    preferred_element_type=jnp.float32)
        y = y + jnp.dot(w_ref[row: row + op, :ip], x_m1,
                        preferred_element_type=jnp.float32)
        y = y + jnp.dot(w_ref[row + 2 * op: row + 3 * op, :ip], x_p1,
                        preferred_element_type=jnp.float32)
        return y

    def bn_relu(y, lidx):
        # BatchNorm1d (training): biased stats over the N*L real tokens.
        # Centered two-pass form (numerically safe vs E[y^2]-mean^2).
        op = layers[lidx][1]
        g = v_ref[:op, 2 * lidx: 2 * lidx + 1]
        be = v_ref[:op, 2 * lidx + 1: 2 * lidx + 2]
        if has_pad:
            y = y * valid                                     # padded lanes -> 0
        mean = jnp.sum(y, axis=1, keepdims=True) * inv_n
        c = y - mean
        if has_pad:
            c = c * valid                                     # keep var sum clean
        var = jnp.sum(c * c, axis=1, keepdims=True) * inv_n
        scale = jax.lax.rsqrt(var + 1e-5) * g
        return jnp.maximum(c * scale + be, 0.0)

    # encoder
    h = bn_relu(conv3(h, 0), 0)
    h = bn_relu(conv3(h, 1), 1)
    h = bn_relu(conv3(h, 2), 2)
    # decoder
    h = bn_relu(conv3(h, 3), 3)
    h = bn_relu(conv3(h, 4), 4)
    y = conv3(h, 5) + v_ref[:layers[5][1], 10:11]             # bias of last layer
    out = 0.5 * (jnp.tanh(0.5 * y) + 1.0)                     # sigmoid via EUP tanh
    for b in range(n_batch):                                  # back to (N, C, Lpad)
        o_ref[b] = out[:, b * lpad:(b + 1) * lpad].astype(o_ref.dtype)


# ----------------------------- wrapper ---------------------------------------
def _vmem_limit_bytes():
    cap = 128 * 1024 * 1024
    try:
        cap = int(getattr(pltpu.get_tpu_info(), "vmem_capacity_bytes", cap))
    except Exception:
        pass
    # leave headroom for Mosaic scratch / DMA buffers (esp. v7x's 64 MiB core).
    return int(cap * 0.8)


def audio_encoder_decoder(x_ncl, packed, meta):
    """Forward pass matching PyTorch AudioEncoderDecoder (NCL in, NCL out)."""
    layers, c_out = meta
    n, c_in, seq = x_ncl.shape
    lpad = ((seq + 127) // 128) * 128           # lane-align each sequence
    x_in = x_ncl if lpad == seq else jnp.pad(x_ncl, ((0, 0), (0, 0), (0, lpad - seq)))
    op6 = layers[5][1]

    kern = functools.partial(fused_encoder_decoder_kernel,
                             n_batch=n, seq_len=seq, lpad=lpad, layers=layers)
    vmem = pl.BlockSpec(memory_space=pltpu.MemorySpace.VMEM)
    out = pl.pallas_call(
        kern,
        out_shape=jax.ShapeDtypeStruct((n, op6, lpad), jnp.float32),
        in_specs=[vmem, vmem, vmem],
        out_specs=vmem,
        compiler_params=pltpu.CompilerParams(vmem_limit_bytes=_vmem_limit_bytes()),
    )(x_in, packed["w"], packed["v"])
    return out[:, :c_out, :seq]                 # drop channel / lane padding


# ------------------- parameter init & one-time packing -----------------------
def init_params(key, in_ch, hidden, out_ch):
    keys = iter(jax.random.split(key, 32))

    def conv_w(o, i):
        return 0.2 * jax.random.normal(next(keys), (o, i, 3), jnp.float32)

    def convt_w(i, o):
        return 0.2 * jax.random.normal(next(keys), (i, o, 3), jnp.float32)

    def vec(c, scale=0.1):
        return scale * jax.random.normal(next(keys), (c,), jnp.float32)

    h = hidden
    p = {}
    p["e1_w"], p["e1_b"], p["e1_g"], p["e1_be"] = conv_w(h, in_ch), vec(h), 1.0 + vec(h), vec(h)
    p["e2_w"], p["e2_b"], p["e2_g"], p["e2_be"] = conv_w(2 * h, h), vec(2 * h), 1.0 + vec(2 * h), vec(2 * h)
    p["e3_w"], p["e3_b"], p["e3_g"], p["e3_be"] = conv_w(4 * h, 2 * h), vec(4 * h), 1.0 + vec(4 * h), vec(4 * h)
    p["d1_w"], p["d1_b"], p["d1_g"], p["d1_be"] = convt_w(4 * h, 2 * h), vec(2 * h), 1.0 + vec(2 * h), vec(2 * h)
    p["d2_w"], p["d2_b"], p["d2_g"], p["d2_be"] = convt_w(2 * h, h), vec(h), 1.0 + vec(h), vec(h)
    p["d3_w"], p["d3_b"] = convt_w(h, out_ch), vec(out_ch)
    return p


def pack_params(p):
    """One-time packing: all conv weights into one (rows, Cmax) slab, all
    per-channel vectors into one (Cmax, 11) column table. Returns (packed, meta);
    meta = (6x (row_offset, out_pad, in_pad), c_out) and is static."""
    c_in = p["e1_w"].shape[1]
    c_out = p["d3_b"].shape[0]

    def r8(n):                       # round channels up to a sublane multiple
        return ((n + 7) // 8) * 8

    def conv_taps(w):                # Conv1d (O, I, 3): taps for [x_m1, x, x_p1]
        return [w[:, :, 0], w[:, :, 1], w[:, :, 2]]

    def convt_taps(w):               # ConvTranspose1d (I, O, 3): flipped + transposed
        return [w[:, :, 2].T, w[:, :, 1].T, w[:, :, 0].T]

    taps = [conv_taps(p["e1_w"]), conv_taps(p["e2_w"]), conv_taps(p["e3_w"]),
            convt_taps(p["d1_w"]), convt_taps(p["d2_w"]), convt_taps(p["d3_w"])]
    vecs = [(p["e1_g"], p["e1_be"]), (p["e2_g"], p["e2_be"]), (p["e3_g"], p["e3_be"]),
            (p["d1_g"], p["d1_be"]), (p["d2_g"], p["d2_be"])]

    # padded channel chain: layer 1 consumes the raw input channels, everything
    # downstream is padded to 8 so every vreg / weight slice is full-width.
    in_pads, out_pads, prev = [], [], c_in
    for t in taps:
        in_pads.append(prev)
        out_pads.append(r8(t[0].shape[0]))
        prev = out_pads[-1]

    wcols = max(in_pads)
    blocks, layer_meta, row = [], [], 0
    for l, t in enumerate(taps):
        op, ip = out_pads[l], in_pads[l]
        layer_meta.append((row, op, ip))
        for k in range(3):
            blk = jnp.zeros((op, wcols), jnp.float32)
            blk = blk.at[:t[k].shape[0], :t[k].shape[1]].set(t[k])
            blocks.append(blk)
        row += 3 * op
    wpack = jnp.concatenate(blocks, axis=0)

    cmax = max(out_pads)
    cols = []
    for g, be in vecs:
        for v in (g, be):            # zero-padded entries keep padded channels at 0
            cols.append(jnp.zeros((cmax,), jnp.float32).at[:v.shape[0]].set(v))
    cols.append(jnp.zeros((cmax,), jnp.float32).at[:c_out].set(p["d3_b"]))
    vpack = jnp.stack(cols, axis=1)  # (cmax, 11): g1,be1,...,g5,be5,b6

    meta = (tuple(layer_meta), c_out)
    return {"w": wpack, "v": vpack}, meta


# ---------------- pure-JAX reference (for correctness check) ----------------
def _ref_conv(x, w, b):      # x NCL, w (O, I, 3)
    seq = x.shape[-1]
    xp = jnp.pad(x, ((0, 0), (0, 0), (1, 1)))
    y = sum(jnp.einsum("oi,nil->nol", w[:, :, k], xp[:, :, k:k + seq],
                       precision=jax.lax.Precision.HIGHEST) for k in range(3))
    return y + b[None, :, None]


def _ref_convt(x, w, b):     # x NCL, w (I, O, 3)
    seq = x.shape[-1]
    xp = jnp.pad(x, ((0, 0), (0, 0), (1, 1)))
    y = sum(jnp.einsum("io,nil->nol", w[:, :, k], xp[:, :, 2 - k:2 - k + seq],
                       precision=jax.lax.Precision.HIGHEST) for k in range(3))
    return y + b[None, :, None]


def _ref_bn(y, g, be):
    mean = jnp.mean(y, axis=(0, 2), keepdims=True)
    var = jnp.mean(jnp.square(y - mean), axis=(0, 2), keepdims=True)
    return (y - mean) * jax.lax.rsqrt(var + 1e-5) * g[None, :, None] + be[None, :, None]


def reference_forward(x, p):
    t = jax.nn.relu(_ref_bn(_ref_conv(x, p["e1_w"], p["e1_b"]), p["e1_g"], p["e1_be"]))
    t = jax.nn.relu(_ref_bn(_ref_conv(t, p["e2_w"], p["e2_b"]), p["e2_g"], p["e2_be"]))
    t = jax.nn.relu(_ref_bn(_ref_conv(t, p["e3_w"], p["e3_b"]), p["e3_g"], p["e3_be"]))
    t = jax.nn.relu(_ref_bn(_ref_convt(t, p["d1_w"], p["d1_b"]), p["d1_g"], p["d1_be"]))
    t = jax.nn.relu(_ref_bn(_ref_convt(t, p["d2_w"], p["d2_b"]), p["d2_g"], p["d2_be"]))
    t = 1.0 / (1.0 + jnp.exp(-_ref_convt(t, p["d3_w"], p["d3_b"])))
    return t


if __name__ == "__main__":
    key = jax.random.PRNGKey(0)
    kx, kp = jax.random.split(key)
    batch, in_channels, seq_len = 2, 4, 16
    hidden, out_channels = 8, 4

    x = jax.random.normal(kx, (batch, in_channels, seq_len), jnp.float32)
    params = init_params(kp, in_channels, hidden, out_channels)
    packed, meta = pack_params(params)

    fwd = jax.jit(audio_encoder_decoder, static_argnums=(2,))
    out = jax.block_until_ready(fwd(x, packed, meta))
    ref = jax.block_until_ready(reference_forward(x, params))

    assert out.shape == (batch, out_channels, seq_len), out.shape
    max_err = float(jnp.max(jnp.abs(out - ref)))
    assert jnp.allclose(out, ref, atol=5e-3, rtol=5e-3), f"max_err={max_err}"
    print("KERNEL_OK")
</pallas_src>

<mosaic_0001>
module attributes {stable_mosaic.version = 11 : i64} {
  func.func @fused_encoder_decoder_kernel(%arg0: memref<2x4x128xf32, #tpu.memory_space<vmem>>, %arg1: memref<264x32xf32, #tpu.memory_space<vmem>>, %arg2: memref<32x11xf32, #tpu.memory_space<vmem>>, %arg3: memref<2x8x128xf32, #tpu.memory_space<vmem>>) attributes {dimension_semantics = [], scalar_prefetch = 0 : i64, scratch_operands = 0 : i64, tpu.core_type = #tpu.core_type<tc>} {
    %0 = tpu.iota {dimensions = array<i32: 1>} : vector<1x256xi32>
    %c128_i32 = arith.constant 128 : i32
    %c0_i32 = arith.constant 0 : i32
    %1 = arith.cmpi eq, %c128_i32, %c0_i32 : i32
    %c1_i32 = arith.constant 1 : i32
    %2 = arith.select %1, %c1_i32, %c128_i32 : i32
    %3 = vector.broadcast %2 : i32 to vector<1x256xi32>
    %4 = arith.remsi %0, %3 : vector<1x256xi32>
    %c0_i32_0 = arith.constant 0 : i32
    %5 = vector.broadcast %c0_i32_0 : i32 to vector<1x256xi32>
    %6 = arith.cmpi ne, %4, %5 : vector<1x256xi32>
    %c0_i32_1 = arith.constant 0 : i32
    %7 = vector.broadcast %c0_i32_1 : i32 to vector<1x256xi32>
    %8 = arith.cmpi slt, %4, %7 : vector<1x256xi32>
    %c0_i32_2 = arith.constant 0 : i32
    %9 = arith.cmpi slt, %2, %c0_i32_2 : i32
    %10 = vector.broadcast %9 : i1 to vector<1x256xi1>
    %11 = vector.broadcast %10 : vector<1x256xi1> to vector<1x256xi1>
    %12 = arith.xori %8, %11 : vector<1x256xi1>
    %13 = arith.andi %12, %6 : vector<1x256xi1>
    %14 = vector.broadcast %2 : i32 to vector<1x256xi32>
    %15 = arith.addi %4, %14 : vector<1x256xi32>
    %16 = arith.select %13, %15, %4 : vector<1x256xi1>, vector<1x256xi32>
    %c0_i32_3 = arith.constant 0 : i32
    %17 = vector.broadcast %c0_i32_3 : i32 to vector<1x256xi32>
    %18 = arith.cmpi ne, %16, %17 : vector<1x256xi32>
    %19 = arith.extui %18 : vector<1x256xi1> to vector<1x256xi32>
    %20 = arith.sitofp %19 : vector<1x256xi32> to vector<1x256xf32>
    %c15_i32 = arith.constant 15 : i32
    %21 = vector.broadcast %c15_i32 : i32 to vector<1x256xi32>
    %22 = arith.cmpi ne, %16, %21 : vector<1x256xi32>
    %23 = arith.extui %22 : vector<1x256xi1> to vector<1x256xi32>
    %24 = arith.sitofp %23 : vector<1x256xi32> to vector<1x256xf32>
    %c16_i32 = arith.constant 16 : i32
    %25 = vector.broadcast %c16_i32 : i32 to vector<1x256xi32>
    %26 = arith.cmpi slt, %16, %25 : vector<1x256xi32>
    %27 = arith.extui %26 : vector<1x256xi1> to vector<1x256xi32>
    %28 = arith.sitofp %27 : vector<1x256xi32> to vector<1x256xf32>
    %c0 = arith.constant 0 : index
    %c0_4 = arith.constant 0 : index
    %c0_5 = arith.constant 0 : index
    %29 = vector.load %arg0[%c0, %c0_4, %c0_5] : memref<2x4x128xf32, #tpu.memory_space<vmem>>, vector<1x4x128xf32>
    %30 = vector.shape_cast %29 : vector<1x4x128xf32> to vector<4x128xf32>
    %c1 = arith.constant 1 : index
    %c0_6 = arith.constant 0 : index
    %c0_7 = arith.constant 0 : index
    %31 = vector.load %arg0[%c1, %c0_6, %c0_7] : memref<2x4x128xf32, #tpu.memory_space<vmem>>, vector<1x4x128xf32>
    %32 = vector.shape_cast %31 : vector<1x4x128xf32> to vector<4x128xf32>
    %33 = tpu.concatenate %30, %32 in 1 : vector<4x128xf32>, vector<4x128xf32> -> vector<4x256xf32>
    %c1_i32_8 = arith.constant 1 : i32
    %34 = tpu.dynamic_rotate %33 by %c1_i32_8 dim 1 : vector<4x256xf32>, i32 -> vector<4x256xf32>
    %35 = vector.broadcast %20 : vector<1x256xf32> to vector<4x256xf32>
    %36 = arith.mulf %34, %35 : vector<4x256xf32>
    %c255_i32 = arith.constant 255 : i32
    %37 = tpu.dynamic_rotate %33 by %c255_i32 dim 1 : vector<4x256xf32>, i32 -> vector<4x256xf32>
    %38 = vector.broadcast %24 : vector<1x256xf32> to vector<4x256xf32>
    %39 = arith.mulf %37, %38 : vector<4x256xf32>
    %c8 = arith.constant 8 : index
    %c0_9 = arith.constant 0 : index
    %40 = vector.load %arg1[%c8, %c0_9] : memref<264x32xf32, #tpu.memory_space<vmem>>, vector<8x4xf32>
    %cst = arith.constant dense<0.000000e+00> : vector<8x256xf32>
    %41 = tpu.matmul %40, %33, %cst {dimension_numbers = #tpu.dot_dimension_numbers<[1], [0], [0], [1], [0, 0, 1, 1], [], []>} : vector<8x4xf32>, vector<4x256xf32>, vector<8x256xf32> -> vector<8x256xf32>
    %c0_10 = arith.constant 0 : index
    %c0_11 = arith.constant 0 : index
    %42 = vector.load %arg1[%c0_10, %c0_11] : memref<264x32xf32, #tpu.memory_space<vmem>>, vector<8x4xf32>
    %cst_12 = arith.constant dense<0.000000e+00> : vector<8x256xf32>
    %43 = tpu.matmul %42, %36, %cst_12 {dimension_numbers = #tpu.dot_dimension_numbers<[1], [0], [0], [1], [0, 0, 1, 1], [], []>} : vector<8x4xf32>, vector<4x256xf32>, vector<8x256xf32> -> vector<8x256xf32>
    %44 = arith.addf %41, %43 : vector<8x256xf32>
    %c16 = arith.constant 16 : index
    %c0_13 = arith.constant 0 : index
    %45 = vector.load %arg1[%c16, %c0_13] : memref<264x32xf32, #tpu.memory_space<vmem>>, vector<8x4xf32>
    %cst_14 = arith.constant dense<0.000000e+00> : vector<8x256xf32>
    %46 = tpu.matmul %45, %39, %cst_14 {dimension_numbers = #tpu.dot_dimension_numbers<[1], [0], [0], [1], [0, 0, 1, 1], [], []>} : vector<8x4xf32>, vector<4x256xf32>, vector<8x256xf32> -> vector<8x256xf32>
    %47 = arith.addf %44, %46 : vector<8x256xf32>
    %c0_15 = arith.constant 0 : index
    %c0_16 = arith.constant 0 : index
    %48 = vector.load %arg2[%c0_15, %c0_16] : memref<32x11xf32, #tpu.memory_space<vmem>>, vector<8x1xf32>
    %c0_17 = arith.constant 0 : index
    %c1_18 = arith.constant 1 : index
    %49 = vector.load %arg2[%c0_17, %c1_18] : memref<32x11xf32, #tpu.memory_space<vmem>>, vector<8x1xf32>
    %50 = vector.broadcast %28 : vector<1x256xf32> to vector<8x256xf32>
    %51 = arith.mulf %47, %50 : vector<8x256xf32>
    %cst_19 = arith.constant dense<0.000000e+00> : vector<8xf32>
    %52 = vector.multi_reduction <add>, %51, %cst_19 [1] : vector<8x256xf32> to vector<8xf32>
    %53 = vector.shape_cast %52 : vector<8xf32> to vector<8x1xf32>
    %cst_20 = arith.constant 3.125000e-02 : f32
    %54 = vector.broadcast %cst_20 : f32 to vector<8x1xf32>
    %55 = arith.mulf %53, %54 : vector<8x1xf32>
    %56 = vector.broadcast %55 : vector<8x1xf32> to vector<8x256xf32>
    %57 = arith.subf %51, %56 : vector<8x256xf32>
    %58 = vector.broadcast %28 : vector<1x256xf32> to vector<8x256xf32>
    %59 = arith.mulf %57, %58 : vector<8x256xf32>
    %60 = arith.mulf %59, %59 : vector<8x256xf32>
    %cst_21 = arith.constant dense<0.000000e+00> : vector<8xf32>
    %61 = vector.multi_reduction <add>, %60, %cst_21 [1] : vector<8x256xf32> to vector<8xf32>
    %62 = vector.shape_cast %61 : vector<8xf32> to vector<8x1xf32>
    %cst_22 = arith.constant 3.125000e-02 : f32
    %63 = vector.broadcast %cst_22 : f32 to vector<8x1xf32>
    %64 = arith.mulf %62, %63 : vector<8x1xf32>
    %cst_23 = arith.constant 9.99999974E-6 : f32
    %65 = vector.broadcast %cst_23 : f32 to vector<8x1xf32>
    %66 = arith.addf %64, %65 : vector<8x1xf32>
    %67 = math.rsqrt %66 : vector<8x1xf32>
    %68 = arith.mulf %67, %48 : vector<8x1xf32>
    %69 = vector.broadcast %68 : vector<8x1xf32> to vector<8x256xf32>
    %70 = arith.mulf %59, %69 : vector<8x256xf32>
    %71 = vector.broadcast %49 : vector<8x1xf32> to vector<8x256xf32>
    %72 = arith.addf %70, %71 : vector<8x256xf32>
    %cst_24 = arith.constant 0.000000e+00 : f32
    %73 = vector.broadcast %cst_24 : f32 to vector<8x256xf32>
    %74 = arith.maximumf %72, %73 : vector<8x256xf32>
    %c1_i32_25 = arith.constant 1 : i32
    %75 = tpu.dynamic_rotate %74 by %c1_i32_25 dim 1 : vector<8x256xf32>, i32 -> vector<8x256xf32>
    %76 = vector.broadcast %20 : vector<1x256xf32> to vector<8x256xf32>
    %77 = arith.mulf %75, %76 : vector<8x256xf32>
    %c255_i32_26 = arith.constant 255 : i32
    %78 = tpu.dynamic_rotate %74 by %c255_i32_26 dim 1 : vector<8x256xf32>, i32 -> vector<8x256xf32>
    %79 = vector.broadcast %24 : vector<1x256xf32> to vector<8x256xf32>
    %80 = arith.mulf %78, %79 : vector<8x256xf32>
    %c40 = arith.constant 40 : index
    %c0_27 = arith.constant 0 : index
    %81 = vector.load %arg1[%c40, %c0_27] : memref<264x32xf32, #tpu.memory_space<vmem>>, vector<16x8xf32>
    %cst_28 = arith.constant dense<0.000000e+00> : vector<16x256xf32>
    %82 = tpu.matmul %81, %74, %cst_28 {dimension_numbers = #tpu.dot_dimension_numbers<[1], [0], [0], [1], [0, 0, 1, 1], [], []>} : vector<16x8xf32>, vector<8x256xf32>, vector<16x256xf32> -> vector<16x256xf32>
    %c24 = arith.constant 24 : index
    %c0_29 = arith.constant 0 : index
    %83 = vector.load %arg1[%c24, %c0_29] : memref<264x32xf32, #tpu.memory_space<vmem>>, vector<16x8xf32>
    %cst_30 = arith.constant dense<0.000000e+00> : vector<16x256xf32>
    %84 = tpu.matmul %83, %77, %cst_30 {dimension_numbers = #tpu.dot_dimension_numbers<[1], [0], [0], [1], [0, 0, 1, 1], [], []>} : vector<16x8xf32>, vector<8x256xf32>, vector<16x256xf32> -> vector<16x256xf32>
    %85 = arith.addf %82, %84 : vector<16x256xf32>
    %c56 = arith.constant 56 : index
    %c0_31 = arith.constant 0 : index
    %86 = vector.load %arg1[%c56, %c0_31] : memref<264x32xf32, #tpu.memory_space<vmem>>, vector<16x8xf32>
    %cst_32 = arith.constant dense<0.000000e+00> : vector<16x256xf32>
    %87 = tpu.matmul %86, %80, %cst_32 {dimension_numbers = #tpu.dot_dimension_numbers<[1], [0], [0], [1], [0, 0, 1, 1], [], []>} : vector<16x8xf32>, vector<8x256xf32>, vector<16x256xf32> -> vector<16x256xf32>
    %88 = arith.addf %85, %87 : vector<16x256xf32>
    %c0_33 = arith.constant 0 : index
    %c2 = arith.constant 2 : index
    %89 = vector.load %arg2[%c0_33, %c2] : memref<32x11xf32, #tpu.memory_space<vmem>>, vector<16x1xf32>
    %c0_34 = arith.constant 0 : index
    %c3 = arith.constant 3 : index
    %90 = vector.load %arg2[%c0_34, %c3] : memref<32x11xf32, #tpu.memory_space<vmem>>, vector<16x1xf32>
    %91 = vector.broadcast %28 : vector<1x256xf32> to vector<16x256xf32>
    %92 = arith.mulf %88, %91 : vector<16x256xf32>
    %cst_35 = arith.constant dense<0.000000e+00> : vector<16xf32>
    %93 = vector.multi_reduction <add>, %92, %cst_35 [1] : vector<16x256xf32> to vector<16xf32>
    %94 = vector.shape_cast %93 : vector<16xf32> to vector<16x1xf32>
    %cst_36 = arith.constant 3.125000e-02 : f32
    %95 = vector.broadcast %cst_36 : f32 to vector<16x1xf32>
    %96 = arith.mulf %94, %95 : vector<16x1xf32>
    %97 = vector.broadcast %96 : vector<16x1xf32> to vector<16x256xf32>
    %98 = arith.subf %92, %97 : vector<16x256xf32>
    %99 = vector.broadcast %28 : vector<1x256xf32> to vector<16x256xf32>
    %100 = arith.mulf %98, %99 : vector<16x256xf32>
    %101 = arith.mulf %100, %100 : vector<16x256xf32>
    %cst_37 = arith.constant dense<0.000000e+00> : vector<16xf32>
    %102 = vector.multi_reduction <add>, %101, %cst_37 [1] : vector<16x256xf32> to vector<16xf32>
    %103 = vector.shape_cast %102 : vector<16xf32> to vector<16x1xf32>
    %cst_38 = arith.constant 3.125000e-02 : f32
    %104 = vector.broadcast %cst_38 : f32 to vector<16x1xf32>
    %105 = arith.mulf %103, %104 : vector<16x1xf32>
    %cst_39 = arith.constant 9.99999974E-6 : f32
    %106 = vector.broadcast %cst_39 : f32 to vector<16x1xf32>
    %107 = arith.addf %105, %106 : vector<16x1xf32>
    %108 = math.rsqrt %107 : vector<16x1xf32>
    %109 = arith.mulf %108, %89 : vector<16x1xf32>
    %110 = vector.broadcast %109 : vector<16x1xf32> to vector<16x256xf32>
    %111 = arith.mulf %100, %110 : vector<16x256xf32>
    %112 = vector.broadcast %90 : vector<16x1xf32> to vector<16x256xf32>
    %113 = arith.addf %111, %112 : vector<16x256xf32>
    %cst_40 = arith.constant 0.000000e+00 : f32
    %114 = vector.broadcast %cst_40 : f32 to vector<16x256xf32>
    %115 = arith.maximumf %113, %114 : vector<16x256xf32>
    %c1_i32_41 = arith.constant 1 : i32
    %116 = tpu.dynamic_rotate %115 by %c1_i32_41 dim 1 : vector<16x256xf32>, i32 -> vector<16x256xf32>
    %117 = vector.broadcast %20 : vector<1x256xf32> to vector<16x256xf32>
    %118 = arith.mulf %116, %117 : vector<16x256xf32>
    %c255_i32_42 = arith.constant 255 : i32
    %119 = tpu.dynamic_rotate %115 by %c255_i32_42 dim 1 : vector<16x256xf32>, i32 -> vector<16x256xf32>
    %120 = vector.broadcast %24 : vector<1x256xf32> to vector<16x256xf32>
    %121 = arith.mulf %119, %120 : vector<16x256xf32>
    %c104 = arith.constant 104 : index
    %c0_43 = arith.constant 0 : index
    %122 = vector.load %arg1[%c104, %c0_43] : memref<264x32xf32, #tpu.memory_space<vmem>>, vector<32x16xf32>
    %cst_44 = arith.constant dense<0.000000e+00> : vector<32x256xf32>
    %123 = tpu.matmul %122, %115, %cst_44 {dimension_numbers = #tpu.dot_dimension_numbers<[1], [0], [0], [1], [0, 0, 1, 1], [], []>} : vector<32x16xf32>, vector<16x256xf32>, vector<32x256xf32> -> vector<32x256xf32>
    %c72 = arith.constant 72 : index
    %c0_45 = arith.constant 0 : index
    %124 = vector.load %arg1[%c72, %c0_45] : memref<264x32xf32, #tpu.memory_space<vmem>>, vector<32x16xf32>
    %cst_46 = arith.constant dense<0.000000e+00> : vector<32x256xf32>
    %125 = tpu.matmul %124, %118, %cst_46 {dimension_numbers = #tpu.dot_dimension_numbers<[1], [0], [0], [1], [0, 0, 1, 1], [], []>} : vector<32x16xf32>, vector<16x256xf32>, vector<32x256xf32> -> vector<32x256xf32>
    %126 = arith.addf %123, %125 : vector<32x256xf32>
    %c136 = arith.constant 136 : index
    %c0_47 = arith.constant 0 : index
    %127 = vector.load %arg1[%c136, %c0_47] : memref<264x32xf32, #tpu.memory_space<vmem>>, vector<32x16xf32>
    %cst_48 = arith.constant dense<0.000000e+00> : vector<32x256xf32>
    %128 = tpu.matmul %127, %121, %cst_48 {dimension_numbers = #tpu.dot_dimension_numbers<[1], [0], [0], [1], [0, 0, 1, 1], [], []>} : vector<32x16xf32>, vector<16x256xf32>, vector<32x256xf32> -> vector<32x256xf32>
    %129 = arith.addf %126, %128 : vector<32x256xf32>
    %c0_49 = arith.constant 0 : index
    %c4 = arith.constant 4 : index
    %130 = vector.load %arg2[%c0_49, %c4] : memref<32x11xf32, #tpu.memory_space<vmem>>, vector<32x1xf32>
    %c0_50 = arith.constant 0 : index
    %c5 = arith.constant 5 : index
    %131 = vector.load %arg2[%c0_50, %c5] : memref<32x11xf32, #tpu.memory_space<vmem>>, vector<32x1xf32>
    %132 = vector.broadcast %28 : vector<1x256xf32> to vector<32x256xf32>
    %133 = arith.mulf %129, %132 : vector<32x256xf32>
    %cst_51 = arith.constant dense<0.000000e+00> : vector<32xf32>
    %134 = vector.multi_reduction <add>, %133, %cst_51 [1] : vector<32x256xf32> to vector<32xf32>
    %135 = vector.shape_cast %134 : vector<32xf32> to vector<32x1xf32>
    %cst_52 = arith.constant 3.125000e-02 : f32
    %136 = vector.broadcast %cst_52 : f32 to vector<32x1xf32>
    %137 = arith.mulf %135, %136 : vector<32x1xf32>
    %138 = vector.broadcast %137 : vector<32x1xf32> to vector<32x256xf32>
    %139 = arith.subf %133, %138 : vector<32x256xf32>
    %140 = vector.broadcast %28 : vector<1x256xf32> to vector<32x256xf32>
    %141 = arith.mulf %139, %140 : vector<32x256xf32>
    %142 = arith.mulf %141, %141 : vector<32x256xf32>
    %cst_53 = arith.constant dense<0.000000e+00> : vector<32xf32>
    %143 = vector.multi_reduction <add>, %142, %cst_53 [1] : vector<32x256xf32> to vector<32xf32>
    %144 = vector.shape_cast %143 : vector<32xf32> to vector<32x1xf32>
    %cst_54 = arith.constant 3.125000e-02 : f32
    %145 = vector.broadcast %cst_54 : f32 to vector<32x1xf32>
    %146 = arith.mulf %144, %145 : vector<32x1xf32>
    %cst_55 = arith.constant 9.99999974E-6 : f32
    %147 = vector.broadcast %cst_55 : f32 to vector<32x1xf32>
    %148 = arith.addf %146, %147 : vector<32x1xf32>
    %149 = math.rsqrt %148 : vector<32x1xf32>
    %150 = arith.mulf %149, %130 : vector<32x1xf32>
    %151 = vector.broadcast %150 : vector<32x1xf32> to vector<32x256xf32>
    %152 = arith.mulf %141, %151 : vector<32x256xf32>
    %153 = vector.broadcast %131 : vector<32x1xf32> to vector<32x256xf32>
    %154 = arith.addf %152, %153 : vector<32x256xf32>
    %cst_56 = arith.constant 0.000000e+00 : f32
    %155 = vector.broadcast %cst_56 : f32 to vector<32x256xf32>
    %156 = arith.maximumf %154, %155 : vector<32x256xf32>
    %c1_i32_57 = arith.constant 1 : i32
    %157 = tpu.dynamic_rotate %156 by %c1_i32_57 dim 1 : vector<32x256xf32>, i32 -> vector<32x256xf32>
    %158 = vector.broadcast %20 : vector<1x256xf32> to vector<32x256xf32>
    %159 = arith.mulf %157, %158 : vector<32x256xf32>
    %c255_i32_58 = arith.constant 255 : i32
    %160 = tpu.dynamic_rotate %156 by %c255_i32_58 dim 1 : vector<32x256xf32>, i32 -> vector<32x256xf32>
    %161 = vector.broadcast %24 : vector<1x256xf32> to vector<32x256xf32>
    %162 = arith.mulf %160, %161 : vector<32x256xf32>
    %c184 = arith.constant 184 : index
    %c0_59 = arith.constant 0 : index
    %163 = vector.load %arg1[%c184, %c0_59] : memref<264x32xf32, #tpu.memory_space<vmem>>, vector<16x32xf32>
    %cst_60 = arith.constant dense<0.000000e+00> : vector<16x256xf32>
    %164 = tpu.matmul %163, %156, %cst_60 {dimension_numbers = #tpu.dot_dimension_numbers<[1], [0], [0], [1], [0, 0, 1, 1], [], []>} : vector<16x32xf32>, vector<32x256xf32>, vector<16x256xf32> -> vector<16x256xf32>
    %c168 = arith.constant 168 : index
    %c0_61 = arith.constant 0 : index
    %165 = vector.load %arg1[%c168, %c0_61] : memref<264x32xf32, #tpu.memory_space<vmem>>, vector<16x32xf32>
    %cst_62 = arith.constant dense<0.000000e+00> : vector<16x256xf32>
    %166 = tpu.matmul %165, %159, %cst_62 {dimension_numbers = #tpu.dot_dimension_numbers<[1], [0], [0], [1], [0, 0, 1, 1], [], []>} : vector<16x32xf32>, vector<32x256xf32>, vector<16x256xf32> -> vector<16x256xf32>
    %167 = arith.addf %164, %166 : vector<16x256xf32>
    %c200 = arith.constant 200 : index
    %c0_63 = arith.constant 0 : index
    %168 = vector.load %arg1[%c200, %c0_63] : memref<264x32xf32, #tpu.memory_space<vmem>>, vector<16x32xf32>
    %cst_64 = arith.constant dense<0.000000e+00> : vector<16x256xf32>
    %169 = tpu.matmul %168, %162, %cst_64 {dimension_numbers = #tpu.dot_dimension_numbers<[1], [0], [0], [1], [0, 0, 1, 1], [], []>} : vector<16x32xf32>, vector<32x256xf32>, vector<16x256xf32> -> vector<16x256xf32>
    %170 = arith.addf %167, %169 : vector<16x256xf32>
    %c0_65 = arith.constant 0 : index
    %c6 = arith.constant 6 : index
    %171 = vector.load %arg2[%c0_65, %c6] : memref<32x11xf32, #tpu.memory_space<vmem>>, vector<16x1xf32>
    %c0_66 = arith.constant 0 : index
    %c7 = arith.constant 7 : index
    %172 = vector.load %arg2[%c0_66, %c7] : memref<32x11xf32, #tpu.memory_space<vmem>>, vector<16x1xf32>
    %173 = vector.broadcast %28 : vector<1x256xf32> to vector<16x256xf32>
    %174 = arith.mulf %170, %173 : vector<16x256xf32>
    %cst_67 = arith.constant dense<0.000000e+00> : vector<16xf32>
    %175 = vector.multi_reduction <add>, %174, %cst_67 [1] : vector<16x256xf32> to vector<16xf32>
    %176 = vector.shape_cast %175 : vector<16xf32> to vector<16x1xf32>
    %cst_68 = arith.constant 3.125000e-02 : f32
    %177 = vector.broadcast %cst_68 : f32 to vector<16x1xf32>
    %178 = arith.mulf %176, %177 : vector<16x1xf32>
    %179 = vector.broadcast %178 : vector<16x1xf32> to vector<16x256xf32>
    %180 = arith.subf %174, %179 : vector<16x256xf32>
    %181 = vector.broadcast %28 : vector<1x256xf32> to vector<16x256xf32>
    %182 = arith.mulf %180, %181 : vector<16x256xf32>
    %183 = arith.mulf %182, %182 : vector<16x256xf32>
    %cst_69 = arith.constant dense<0.000000e+00> : vector<16xf32>
    %184 = vector.multi_reduction <add>, %183, %cst_69 [1] : vector<16x256xf32> to vector<16xf32>
    %185 = vector.shape_cast %184 : vector<16xf32> to vector<16x1xf32>
    %cst_70 = arith.constant 3.125000e-02 : f32
    %186 = vector.broadcast %cst_70 : f32 to vector<16x1xf32>
    %187 = arith.mulf %185, %186 : vector<16x1xf32>
    %cst_71 = arith.constant 9.99999974E-6 : f32
    %188 = vector.broadcast %cst_71 : f32 to vector<16x1xf32>
    %189 = arith.addf %187, %188 : vector<16x1xf32>
    %190 = math.rsqrt %189 : vector<16x1xf32>
    %191 = arith.mulf %190, %171 : vector<16x1xf32>
    %192 = vector.broadcast %191 : vector<16x1xf32> to vector<16x256xf32>
    %193 = arith.mulf %182, %192 : vector<16x256xf32>
    %194 = vector.broadcast %172 : vector<16x1xf32> to vector<16x256xf32>
    %195 = arith.addf %193, %194 : vector<16x256xf32>
    %cst_72 = arith.constant 0.000000e+00 : f32
    %196 = vector.broadcast %cst_72 : f32 to vector<16x256xf32>
    %197 = arith.maximumf %195, %196 : vector<16x256xf32>
    %c1_i32_73 = arith.constant 1 : i32
    %198 = tpu.dynamic_rotate %197 by %c1_i32_73 dim 1 : vector<16x256xf32>, i32 -> vector<16x256xf32>
    %199 = vector.broadcast %20 : vector<1x256xf32> to vector<16x256xf32>
    %200 = arith.mulf %198, %199 : vector<16x256xf32>
    %c255_i32_74 = arith.constant 255 : i32
    %201 = tpu.dynamic_rotate %197 by %c255_i32_74 dim 1 : vector<16x256xf32>, i32 -> vector<16x256xf32>
    %202 = vector.broadcast %24 : vector<1x256xf32> to vector<16x256xf32>
    %203 = arith.mulf %201, %202 : vector<16x256xf32>
    %c224 = arith.constant 224 : index
    %c0_75 = arith.constant 0 : index
    %204 = vector.load %arg1[%c224, %c0_75] : memref<264x32xf32, #tpu.memory_space<vmem>>, vector<8x16xf32>
    %cst_76 = arith.constant dense<0.000000e+00> : vector<8x256xf32>
    %205 = tpu.matmul %204, %197, %cst_76 {dimension_numbers = #tpu.dot_dimension_numbers<[1], [0], [0], [1], [0, 0, 1, 1], [], []>} : vector<8x16xf32>, vector<16x256xf32>, vector<8x256xf32> -> vector<8x256xf32>
    %c216 = arith.constant 216 : index
    %c0_77 = arith.constant 0 : index
    %206 = vector.load %arg1[%c216, %c0_77] : memref<264x32xf32, #tpu.memory_space<vmem>>, vector<8x16xf32>
    %cst_78 = arith.constant dense<0.000000e+00> : vector<8x256xf32>
    %207 = tpu.matmul %206, %200, %cst_78 {dimension_numbers = #tpu.dot_dimension_numbers<[1], [0], [0], [1], [0, 0, 1, 1], [], []>} : vector<8x16xf32>, vector<16x256xf32>, vector<8x256xf32> -> vector<8x256xf32>
    %208 = arith.addf %205, %207 : vector<8x256xf32>
    %c232 = arith.constant 232 : index
    %c0_79 = arith.constant 0 : index
    %209 = vector.load %arg1[%c232, %c0_79] : memref<264x32xf32, #tpu.memory_space<vmem>>, vector<8x16xf32>
    %cst_80 = arith.constant dense<0.000000e+00> : vector<8x256xf32>
    %210 = tpu.matmul %209, %203, %cst_80 {dimension_numbers = #tpu.dot_dimension_numbers<[1], [0], [0], [1], [0, 0, 1, 1], [], []>} : vector<8x16xf32>, vector<16x256xf32>, vector<8x256xf32> -> vector<8x256xf32>
    %211 = arith.addf %208, %210 : vector<8x256xf32>
    %c0_81 = arith.constant 0 : index
    %c8_82 = arith.constant 8 : index
    %212 = vector.load %arg2[%c0_81, %c8_82] : memref<32x11xf32, #tpu.memory_space<vmem>>, vector<8x1xf32>
    %c0_83 = arith.constant 0 : index
    %c9 = arith.constant 9 : index
    %213 = vector.load %arg2[%c0_83, %c9] : memref<32x11xf32, #tpu.memory_space<vmem>>, vector<8x1xf32>
    %214 = vector.broadcast %28 : vector<1x256xf32> to vector<8x256xf32>
    %215 = arith.mulf %211, %214 : vector<8x256xf32>
    %cst_84 = arith.constant dense<0.000000e+00> : vector<8xf32>
    %216 = vector.multi_reduction <add>, %215, %cst_84 [1] : vector<8x256xf32> to vector<8xf32>
    %217 = vector.shape_cast %216 : vector<8xf32> to vector<8x1xf32>
    %cst_85 = arith.constant 3.125000e-02 : f32
    %218 = vector.broadcast %cst_85 : f32 to vector<8x1xf32>
    %219 = arith.mulf %217, %218 : vector<8x1xf32>
    %220 = vector.broadcast %219 : vector<8x1xf32> to vector<8x256xf32>
    %221 = arith.subf %215, %220 : vector<8x256xf32>
    %222 = vector.broadcast %28 : vector<1x256xf32> to vector<8x256xf32>
    %223 = arith.mulf %221, %222 : vector<8x256xf32>
    %224 = arith.mulf %223, %223 : vector<8x256xf32>
    %cst_86 = arith.constant dense<0.000000e+00> : vector<8xf32>
    %225 = vector.multi_reduction <add>, %224, %cst_86 [1] : vector<8x256xf32> to vector<8xf32>
    %226 = vector.shape_cast %225 : vector<8xf32> to vector<8x1xf32>
    %cst_87 = arith.constant 3.125000e-02 : f32
    %227 = vector.broadcast %cst_87 : f32 to vector<8x1xf32>
    %228 = arith.mulf %226, %227 : vector<8x1xf32>
    %cst_88 = arith.constant 9.99999974E-6 : f32
    %229 = vector.broadcast %cst_88 : f32 to vector<8x1xf32>
    %230 = arith.addf %228, %229 : vector<8x1xf32>
    %231 = math.rsqrt %230 : vector<8x1xf32>
    %232 = arith.mulf %231, %212 : vector<8x1xf32>
    %233 = vector.broadcast %232 : vector<8x1xf32> to vector<8x256xf32>
    %234 = arith.mulf %223, %233 : vector<8x256xf32>
    %235 = vector.broadcast %213 : vector<8x1xf32> to vector<8x256xf32>
    %236 = arith.addf %234, %235 : vector<8x256xf32>
    %cst_89 = arith.constant 0.000000e+00 : f32
    %237 = vector.broadcast %cst_89 : f32 to vector<8x256xf32>
    %238 = arith.maximumf %236, %237 : vector<8x256xf32>
    %c1_i32_90 = arith.constant 1 : i32
    %239 = tpu.dynamic_rotate %238 by %c1_i32_90 dim 1 : vector<8x256xf32>, i32 -> vector<8x256xf32>
    %240 = vector.broadcast %20 : vector<1x256xf32> to vector<8x256xf32>
    %241 = arith.mulf %239, %240 : vector<8x256xf32>
    %c255_i32_91 = arith.constant 255 : i32
    %242 = tpu.dynamic_rotate %238 by %c255_i32_91 dim 1 : vector<8x256xf32>, i32 -> vector<8x256xf32>
    %243 = vector.broadcast %24 : vector<1x256xf32> to vector<8x256xf32>
    %244 = arith.mulf %242, %243 : vector<8x256xf32>
    %c248 = arith.constant 248 : index
    %c0_92 = arith.constant 0 : index
    %245 = vector.load %arg1[%c248, %c0_92] : memref<264x32xf32, #tpu.memory_space<vmem>>, vector<8x8xf32>
    %cst_93 = arith.constant dense<0.000000e+00> : vector<8x256xf32>
    %246 = tpu.matmul %245, %238, %cst_93 {dimension_numbers = #tpu.dot_dimension_numbers<[1], [0], [0], [1], [0, 0, 1, 1], [], []>} : vector<8x8xf32>, vector<8x256xf32>, vector<8x256xf32> -> vector<8x256xf32>
    %c240 = arith.constant 240 : index
    %c0_94 = arith.constant 0 : index
    %247 = vector.load %arg1[%c240, %c0_94] : memref<264x32xf32, #tpu.memory_space<vmem>>, vector<8x8xf32>
    %cst_95 = arith.constant dense<0.000000e+00> : vector<8x256xf32>
    %248 = tpu.matmul %247, %241, %cst_95 {dimension_numbers = #tpu.dot_dimension_numbers<[1], [0], [0], [1], [0, 0, 1, 1], [], []>} : vector<8x8xf32>, vector<8x256xf32>, vector<8x256xf32> -> vector<8x256xf32>
    %249 = arith.addf %246, %248 : vector<8x256xf32>
    %c256 = arith.constant 256 : index
    %c0_96 = arith.constant 0 : index
    %250 = vector.load %arg1[%c256, %c0_96] : memref<264x32xf32, #tpu.memory_space<vmem>>, vector<8x8xf32>
    %cst_97 = arith.constant dense<0.000000e+00> : vector<8x256xf32>
    %251 = tpu.matmul %250, %244, %cst_97 {dimension_numbers = #tpu.dot_dimension_numbers<[1], [0], [0], [1], [0, 0, 1, 1], [], []>} : vector<8x8xf32>, vector<8x256xf32>, vector<8x256xf32> -> vector<8x256xf32>
    %252 = arith.addf %249, %251 : vector<8x256xf32>
    %c0_98 = arith.constant 0 : index
    %c10 = arith.constant 10 : index
    %253 = vector.load %arg2[%c0_98, %c10] : memref<32x11xf32, #tpu.memory_space<vmem>>, vector<8x1xf32>
    %254 = vector.broadcast %253 : vector<8x1xf32> to vector<8x256xf32>
    %255 = arith.addf %252, %254 : vector<8x256xf32>
    %cst_99 = arith.constant 5.000000e-01 : f32
    %256 = vector.broadcast %cst_99 : f32 to vector<8x256xf32>
    %257 = arith.mulf %256, %255 : vector<8x256xf32>
    %258 = math.tanh %257 : vector<8x256xf32>
    %cst_100 = arith.constant 1.000000e+00 : f32
    %259 = vector.broadcast %cst_100 : f32 to vector<8x256xf32>
    %260 = arith.addf %258, %259 : vector<8x256xf32>
    %cst_101 = arith.constant 5.000000e-01 : f32
    %261 = vector.broadcast %cst_101 : f32 to vector<8x256xf32>
    %262 = arith.mulf %261, %260 : vector<8x256xf32>
    %263 = vector.extract_strided_slice %262 {offsets = [0, 0], sizes = [8, 128], strides = [1, 1]} : vector<8x256xf32> to vector<8x128xf32>
    %c0_102 = arith.constant 0 : index
    %c0_103 = arith.constant 0 : index
    %c0_104 = arith.constant 0 : index
    %264 = vector.load %arg3[%c0_102, %c0_103, %c0_104] : memref<2x8x128xf32, #tpu.memory_space<vmem>>, vector<1x8x128xf32>
    %265 = vector.shape_cast %264 : vector<1x8x128xf32> to vector<8x128xf32>
    %266 = vector.shape_cast %263 : vector<8x128xf32> to vector<1x8x128xf32>
    tpu.vector_store %arg3[%c0_102, %c0_103, %c0_104], %266 {strides = array<i32>} : memref<2x8x128xf32, #tpu.memory_space<vmem>>, vector<1x8x128xf32>,
    %267 = vector.extract_strided_slice %262 {offsets = [0, 128], sizes = [8, 128], strides = [1, 1]} : vector<8x256xf32> to vector<8x128xf32>
    %c1_105 = arith.constant 1 : index
    %c0_106 = arith.constant 0 : index
    %c0_107 = arith.constant 0 : index
    %268 = vector.load %arg3[%c1_105, %c0_106, %c0_107] : memref<2x8x128xf32, #tpu.memory_space<vmem>>, vector<1x8x128xf32>
    %269 = vector.shape_cast %268 : vector<1x8x128xf32> to vector<8x128xf32>
    %270 = vector.shape_cast %267 : vector<8x128xf32> to vector<1x8x128xf32>
    tpu.vector_store %arg3[%c1_105, %c0_106, %c0_107], %270 {strides = array<i32>} : memref<2x8x128xf32, #tpu.memory_space<vmem>>, vector<1x8x128xf32>,
    return
  }
}

</mosaic_0001>

<llo_original>
// kernel: audio_encoder_decoder.1
$region0: #{audio_encoder_decoder.1}
  #allocation0 [shape = 'u32[]', space=smem, size = 0x4, offset = 0x4, fixed_abs, tag = 'smem constant byte address 0x4 - core index']
  #allocation1 [shape = 'u32[72,128]{1,0:T(1,128)}', space=vmem, size = 0x9000, scoped, tag = 'internal scratch']
  %s0 = inlined_call_operand.vmem [shape: f32[2,4,128], index: 0, kind: input, shape index: {}]
  %s1 = inlined_call_operand.vmem [shape: f32[264,32], index: 1, kind: input, shape index: {}]
  %s2 = inlined_call_operand.vmem [shape: f32[32,11], index: 2, kind: input, shape index: {}]
  %s3 = inlined_call_operand.vmem [shape: f32[2,8,128], index: 3, kind: output, shape index: {}]
  %s4 = sld [smem:[#allocation0]]
  $region22: #{audio_encoder_decoder.1} parent=0
    _
  %s6 = ssub.s32 1, %s4
  %s7 = scalar_select 0, %s6, %s4
  // Predicated region
  $region2: #{audio_encoder_decoder.1} parent=0 // pred_check
    _
  $region3: #{audio_encoder_decoder.1} parent=0 // pred_check_branch
    %9 = sbr.rel (0) target = $region5
  $region4: #{audio_encoder_decoder.1} parent=0 // pred_region
    _
  $region5: #{audio_encoder_decoder.1} parent=0 // pred_fallthru
    _
  // Predicated region
  $region6: #{audio_encoder_decoder.1} parent=0 // pred_check
    _
  $region7: #{audio_encoder_decoder.1} parent=0 // pred_check_branch
    %11 = sbr.rel (0) target = $region9
  $region8: #{audio_encoder_decoder.1} parent=0 // pred_region
    _
  $region9: #{audio_encoder_decoder.1} parent=0 // pred_fallthru
    _
  // Predicated region
  $region10: #{audio_encoder_decoder.1} parent=0 // pred_check
    _
  $region11: #{audio_encoder_decoder.1} parent=0 // pred_check_branch
    %13 = sbr.rel (0) target = $region13
  $region12: #{audio_encoder_decoder.1} parent=0 // pred_region
    _
  $region13: #{audio_encoder_decoder.1} parent=0 // pred_fallthru
    _
  %v14 = vlaneseq
  %v15 = vand.u32 %v14, 127
  %v16 = vadd.s32 %v15, 128
  %vm17 = vcmp.lt.s32.totalorder %v15, 0
  %v18 = vsub.s32 0, %v15
  %v19 = vsel %vm17, %v18, %v15
  %v20 = vshrl.u32 %v19, 7
  %v21 = vand.u32 %v19, 127
  %v22 = vsub.s32 0, %v21
  %v23 = vsel %vm17, %v22, %v21
  %vm24 = vcmp.lt.s32.totalorder %v16, 0
  %v25 = vsub.s32 0, %v16
  %v26 = vsel %vm24, %v25, %v16
  %v27 = vshrl.u32 %v26, 7
  %v28 = vand.u32 %v26, 127
  %v29 = vsub.s32 0, %v28
  %v30 = vsel %vm24, %v29, %v28
  %vm31 = vcmp.ne.s32.totalorder %v23, 0
  %vm32 = vcmp.ne.s32.totalorder %v30, 0
  %vm33 = vcmp.lt.s32.totalorder %v23, 0
  %vm34 = vcmp.lt.s32.totalorder %v30, 0
  %vm35 = vmand %vm33, %vm31
  %vm36 = vmand %vm34, %vm32
  %v37 = vadd.s32 %v23, 128
  %v38 = vadd.s32 %v30, 128
  %v39 = vsel %vm35, %v37, %v23
  %v40 = vsel %vm36, %v38, %v30
  %vm41 = vcmp.ne.s32.totalorder %v39, 0
  %vm42 = vcmp.ne.s32.totalorder %v40, 0
  %v43 = vsel %vm41, 1, 0
  %v44 = vsel %vm42, 1, 0
  %v45 = vcvt.s32.f32 %v43
  %v46 = vcvt.s32.f32 %v44
  %vm47 = vcmp.ne.s32.totalorder %v39, 15
  %vm48 = vcmp.ne.s32.totalorder %v40, 15
  %v49 = vsel %vm47, 1, 0
  %v50 = vsel %vm48, 1, 0
  %v51 = vcvt.s32.f32 %v49
  %v52 = vcvt.s32.f32 %v50
  %vm53 = vcmp.lt.s32.totalorder %v39, 16
  %vm54 = vcmp.lt.s32.totalorder %v40, 16
  %v55 = vsel %vm53, 1, 0
  %v56 = vsel %vm54, 1, 0
  %v57 = vcvt.s32.f32 %v55
  %v58 = vcvt.s32.f32 %v56
  %v59 = vld [vmem:[%s0] sm:$0xf]
  %s60 = scalar_lea.vmem %s0, 4
  %v61 = vld [vmem:[%s60] sm:$0xf]
  %62 = vrot.lane.b32.xlu0 %v59, 1
  %v63 = vpop.permute.xlu0 %62
  %64 = vrot.lane.b32.xlu0 %v61, 1
  %v65 = vpop.permute.xlu0 %64
  %vm66 = vcmp.lt.s32.totalorder %v15, 1
  %v67 = vsel %vm66, %v63, %v65
  %v68 = vsel %vm66, %v65, %v63
  %v69 = vmul.f32 %v68, %v45
  %v70 = vmul.f32 %v67, %v46
  %71 = vrot.lane.b32.xlu0 %v59, 127
  %v72 = vpop.permute.xlu0 %71
  %73 = vrot.lane.b32.xlu0 %v61, 127
  %v74 = vpop.permute.xlu0 %73
  %vm75 = vcmp.lt.s32.totalorder %v15, 127
  %v76 = vsel %vm75, %v72, %v74
  %v77 = vsel %vm75, %v74, %v72
  %v78 = vmul.f32 %v76, %v51
  %v79 = vmul.f32 %v77, %v52
  %v80 = vld [vmem:[%s1 + $0x8] sm:$0xff]
  %v81 = vld [vmem:[%s1] sm:$0xff]
  %vm82 = vcmask 31744
  %v84 = vsel %vm82, %v81, 0
  %vm86 = vcmask 1043456
  %v88 = vsel %vm86, %v69, 0
  %v91 = vsel %vm86, %v70, 0
  %93 = vmatpush.msra.mxu0 0.0
  %94 = vmatpush.msra.mxu0 0.0
  %95 = vmatpush.msra.mxu0 0.0
  %96 = vmatpush.msra.mxu0 0.0
  %97 = vmatpush.msra.mxu0 0.0
  %98 = vmatpush.msra.mxu0 0.0
  %99 = vmatpush.msra.mxu0 0.0
  %100 = vmatpush.msra.mxu0 0.0
  %101 = vmatpush.msra.mxu0 0.0
  %102 = vmatpush.msra.mxu0 0.0
  %103 = vmatpush.msra.mxu0 0.0
  %104 = vmatpush.msra.mxu0 0.0
  %105 = vmatpush.msra.mxu0 0.0
  %106 = vmatpush.msra.mxu0 0.0
  %107 = vmatpush.msra.mxu0 0.0
  %108 = vmatpush.msra.mxu0 %v88
  %109 = vmatmul.f32.gmra.mxu0 %v84
  %v110 = vpop.f32.mrf.mxu0
  %v111 = vadd.f32 0.0, %v110
  %112 = vdwg.mxu0
  %113 = vmatpush.msra.mxu0 0.0
  %114 = vmatpush.msra.mxu0 0.0
  %115 = vmatpush.msra.mxu0 0.0
  %116 = vmatpush.msra.mxu0 0.0
  %117 = vmatpush.msra.mxu0 0.0
  %118 = vmatpush.msra.mxu0 0.0
  %119 = vmatpush.msra.mxu0 0.0
  %120 = vmatpush.msra.mxu0 0.0
  %121 = vmatpush.msra.mxu0 0.0
  %122 = vmatpush.msra.mxu0 0.0
  %123 = vmatpush.msra.mxu0 0.0
  %124 = vmatpush.msra.mxu0 0.0
  %125 = vmatpush.msra.mxu0 0.0
  %126 = vmatpush.msra.mxu0 0.0
  %127 = vmatpush.msra.mxu0 0.0
  %128 = vmatpush.msra.mxu0 %v91
  %129 = vmatmul.f32.gmra.mxu0 %v84
  %v130 = vpop.f32.mrf.mxu0
  %v131 = vadd.f32 0.0, %v130
  %132 = vdwg.mxu0
  %v134 = vsel %vm82, %v80, 0
  %v137 = vsel %vm86, %v59, 0
  %v140 = vsel %vm86, %v61, 0
  %142 = vmatpush.msra.mxu0 0.0
  %143 = vmatpush.msra.mxu0 0.0
  %144 = vmatpush.msra.mxu0 0.0
  %145 = vmatpush.msra.mxu0 0.0
  %146 = vmatpush.msra.mxu0 0.0
  %147 = vmatpush.msra.mxu0 0.0
  %148 = vmatpush.msra.mxu0 0.0
  %149 = vmatpush.msra.mxu0 0.0
  %150 = vmatpush.msra.mxu0 0.0
  %151 = vmatpush.msra.mxu0 0.0
  %152 = vmatpush.msra.mxu0 0.0
  %153 = vmatpush.msra.mxu0 0.0
  %154 = vmatpush.msra.mxu0 0.0
  %155 = vmatpush.msra.mxu0 0.0
  %156 = vmatpush.msra.mxu0 0.0
  %157 = vmatpush.msra.mxu0 %v137
  %158 = vmatmul.f32.gmra.mxu0 %v134
  %v159 = vpop.f32.mrf.mxu0
  %v160 = vadd.f32 %v111, %v159
  %161 = vdwg.mxu0
  %162 = vmatpush.msra.mxu0 0.0
  %163 = vmatpush.msra.mxu0 0.0
  %164 = vmatpush.msra.mxu0 0.0
  %165 = vmatpush.msra.mxu0 0.0
  %166 = vmatpush.msra.mxu0 0.0
  %167 = vmatpush.msra.mxu0 0.0
  %168 = vmatpush.msra.mxu0 0.0
  %169 = vmatpush.msra.mxu0 0.0
  %170 = vmatpush.msra.mxu0 0.0
  %171 = vmatpush.msra.mxu0 0.0
  %172 = vmatpush.msra.mxu0 0.0
  %173 = vmatpush.msra.mxu0 0.0
  %174 = vmatpush.msra.mxu0 0.0
  %175 = vmatpush.msra.mxu0 0.0
  %176 = vmatpush.msra.mxu0 0.0
  %177 = vmatpush.msra.mxu0 %v140
  %178 = vmatmul.f32.gmra.mxu0 %v134
  %v179 = vpop.f32.mrf.mxu0
  %v180 = vadd.f32 %v131, %v179
  %181 = vdwg.mxu0
  %v182 = vld [vmem:[%s1 + $0x10] sm:$0xff]
  %v184 = vsel %vm82, %v182, 0
  %v187 = vsel %vm86, %v78, 0
  %v190 = vsel %vm86, %v79, 0
  %192 = vmatpush.msra.mxu0 0.0
  %193 = vmatpush.msra.mxu0 0.0
  %194 = vmatpush.msra.mxu0 0.0
  %195 = vmatpush.msra.mxu0 0.0
  %196 = vmatpush.msra.mxu0 0.0
  %197 = vmatpush.msra.mxu0 0.0
  %198 = vmatpush.msra.mxu0 0.0
  %199 = vmatpush.msra.mxu0 0.0
  %200 = vmatpush.msra.mxu0 0.0
  %201 = vmatpush.msra.mxu0 0.0
  %202 = vmatpush.msra.mxu0 0.0
  %203 = vmatpush.msra.mxu0 0.0
  %204 = vmatpush.msra.mxu0 0.0
  %205 = vmatpush.msra.mxu0 0.0
  %206 = vmatpush.msra.mxu0 0.0
  %207 = vmatpush.msra.mxu0 %v187
  %208 = vmatmul.f32.gmra.mxu0 %v184
  %v209 = vpop.f32.mrf.mxu0
  %v210 = vadd.f32 0.0, %v209
  %211 = vdwg.mxu0
  %212 = vmatpush.msra.mxu0 0.0
  %213 = vmatpush.msra.mxu0 0.0
  %214 = vmatpush.msra.mxu0 0.0
  %215 = vmatpush.msra.mxu0 0.0
  %216 = vmatpush.msra.mxu0 0.0
  %217 = vmatpush.msra.mxu0 0.0
  %218 = vmatpush.msra.mxu0 0.0
  %219 = vmatpush.msra.mxu0 0.0
  %220 = vmatpush.msra.mxu0 0.0
  %221 = vmatpush.msra.mxu0 0.0
  %222 = vmatpush.msra.mxu0 0.0
  %223 = vmatpush.msra.mxu0 0.0
  %224 = vmatpush.msra.mxu0 0.0
  %225 = vmatpush.msra.mxu0 0.0
  %226 = vmatpush.msra.mxu0 0.0
  %227 = vmatpush.msra.mxu0 %v190
  %228 = vmatmul.f32.gmra.mxu0 %v184
  %v229 = vpop.f32.mrf.mxu0
  %v230 = vadd.f32 0.0, %v229
  %231 = vdwg.mxu0
  %v232 = vadd.f32 %v160, %v210
  %v233 = vadd.f32 %v180, %v230
  %v234 = vld [vmem:[%s2] sm:$0xff]
  %v235 = vmul.f32 %v232, %v57
  %v236 = vmul.f32 %v233, %v58
  %v237 = vadd.f32 %v235, %v236
  %238 = vadd.xlane.f32.xlu0 %v237
  %v239 = vpop.xlane.xlu0 %238
  %v240 = vmul.f32 %v239, 0.03125
  %v241 = vsub.f32 %v235, %v240
  %v242 = vsub.f32 %v236, %v240
  %v243 = vmul.f32 %v241, %v57
  %v244 = vmul.f32 %v242, %v58
  %v245 = vmul.f32 %v243, %v243
  %v246 = vmul.f32 %v244, %v244
  %v247 = vadd.f32 %v245, %v246
  %248 = vadd.xlane.f32.xlu0 %v247
  %v249 = vpop.xlane.xlu0 %248
  %v250 = vmul.f32 %v249, 0.03125
  %v251 = vadd.f32 %v250, 1e-05
  %v252 = vrsqrt.pop %v251
  %v253 = vmul.f32 %v252, %v251
  %v254 = vmul.f32 %v253, %v252
  %v255 = vmul.f32 0.5, %v254
  %v256 = vsub.f32 1.5, %v255
  %v257 = vmul.f32 %v252, %v256
  %vm258 = vweird.f32 %v251
  %vm259 = vweird.f32 %v252
  %vm260 = vmor %vm258, %vm259
  %v261 = vsel %vm260, %v252, %v257
  %v262 = vmul.f32 %v261, %v234
  %264 = vset.pattern.permute.xlu0 0
  %265 = vperm.xlu0 %264, %v262
  %v266 = vpop.permute.xlu0 %265
  %v268 = vmul.f32 %v243, %v266
  %v269 = vmul.f32 %v244, %v266
  %271 = vset.pattern.permute.xlu0 1
  %272 = vperm.xlu0 %271, %v234
  %v273 = vpop.permute.xlu0 %272
  %v275 = vadd.f32 %v268, %v273
  %v276 = vadd.f32 %v269, %v273
  %v277 = vmax.f32 %v275, 0.0
  %v278 = vmax.f32 %v276, 0.0
  %279 = vrot.lane.b32.xlu0 %v277, 1
  %v280 = vpop.permute.xlu0 %279
  %281 = vrot.lane.b32.xlu0 %v278, 1
  %v282 = vpop.permute.xlu0 %281
  %v283 = vsel %vm66, %v280, %v282
  %v284 = vsel %vm66, %v282, %v280
  %v285 = vmul.f32 %v284, %v45
  %v286 = vmul.f32 %v283, %v46
  %287 = vrot.lane.b32.xlu0 %v277, 127
  %v288 = vpop.permute.xlu0 %287
  %289 = vrot.lane.b32.xlu0 %v278, 127
  %v290 = vpop.permute.xlu0 %289
  %v291 = vsel %vm75, %v288, %v290
  %v292 = vsel %vm75, %v290, %v288
  %v293 = vmul.f32 %v291, %v51
  %v294 = vmul.f32 %v292, %v52
  %v295 = vld [vmem:[%s1 + $0x28] sm:$0xff]
  %v296 = vld [vmem:[%s1 + $0x30] sm:$0xff]
  %v297 = vld [vmem:[%s1 + $0x18] sm:$0xff]
  %v298 = vld [vmem:[%s1 + $0x20] sm:$0xff]
  %vm299 = vcmask 64512
  %v301 = vsel %vm299, %v297, 0
  %v304 = vsel %vm299, %v298, 0
  %306 = vmatpush.msra.mxu0 0.0
  %307 = vmatpush.msra.mxu0 0.0
  %308 = vmatpush.msra.mxu0 0.0
  %309 = vmatpush.msra.mxu0 0.0
  %310 = vmatpush.msra.mxu0 0.0
  %311 = vmatpush.msra.mxu0 0.0
  %312 = vmatpush.msra.mxu0 0.0
  %313 = vmatpush.msra.mxu0 0.0
  %314 = vmatpush.msra.mxu0 0.0
  %315 = vmatpush.msra.mxu0 0.0
  %316 = vmatpush.msra.mxu0 0.0
  %317 = vmatpush.msra.mxu0 0.0
  %318 = vmatpush.msra.mxu0 0.0
  %319 = vmatpush.msra.mxu0 0.0
  %320 = vmatpush.msra.mxu0 0.0
  %321 = vmatpush.msra.mxu0 %v285
  %322 = vmatmul.f32.gmra.mxu0 %v301
  %v323 = vpop.f32.mrf.mxu0
  %v324 = vadd.f32 0.0, %v323
  %325 = vmatmul.f32.gmra.mxu0 %v304
  %v326 = vpop.f32.mrf.mxu0
  %v327 = vadd.f32 0.0, %v326
  %328 = vdwg.mxu0
  %329 = vmatpush.msra.mxu0 0.0
  %330 = vmatpush.msra.mxu0 0.0
  %331 = vmatpush.msra.mxu0 0.0
  %332 = vmatpush.msra.mxu0 0.0
  %333 = vmatpush.msra.mxu0 0.0
  %334 = vmatpush.msra.mxu0 0.0
  %335 = vmatpush.msra.mxu0 0.0
  %336 = vmatpush.msra.mxu0 0.0
  %337 = vmatpush.msra.mxu0 0.0
  %338 = vmatpush.msra.mxu0 0.0
  %339 = vmatpush.msra.mxu0 0.0
  %340 = vmatpush.msra.mxu0 0.0
  %341 = vmatpush.msra.mxu0 0.0
  %342 = vmatpush.msra.mxu0 0.0
  %343 = vmatpush.msra.mxu0 0.0
  %344 = vmatpush.msra.mxu0 %v286
  %345 = vmatmul.f32.gmra.mxu0 %v301
  %v346 = vpop.f32.mrf.mxu0
  %v347 = vadd.f32 0.0, %v346
  %348 = vmatmul.f32.gmra.mxu0 %v304
  %v349 = vpop.f32.mrf.mxu0
  %v350 = vadd.f32 0.0, %v349
  %351 = vdwg.mxu0
  %v353 = vsel %vm299, %v295, 0
  %v356 = vsel %vm299, %v296, 0
  %358 = vmatpush.msra.mxu0 0.0
  %359 = vmatpush.msra.mxu0 0.0
  %360 = vmatpush.msra.mxu0 0.0
  %361 = vmatpush.msra.mxu0 0.0
  %362 = vmatpush.msra.mxu0 0.0
  %363 = vmatpush.msra.mxu0 0.0
  %364 = vmatpush.msra.mxu0 0.0
  %365 = vmatpush.msra.mxu0 0.0
  %366 = vmatpush.msra.mxu0 0.0
  %367 = vmatpush.msra.mxu0 0.0
  %368 = vmatpush.msra.mxu0 0.0
  %369 = vmatpush.msra.mxu0 0.0
  %370 = vmatpush.msra.mxu0 0.0
  %371 = vmatpush.msra.mxu0 0.0
  %372 = vmatpush.msra.mxu0 0.0
  %373 = vmatpush.msra.mxu0 %v277
  %374 = vmatmul.f32.gmra.mxu0 %v353
  %v375 = vpop.f32.mrf.mxu0
  %v376 = vadd.f32 %v324, %v375
  %377 = vmatmul.f32.gmra.mxu0 %v356
  %v378 = vpop.f32.mrf.mxu0
  %v379 = vadd.f32 %v327, %v378
  %380 = vdwg.mxu0
  %381 = vmatpush.msra.mxu0 0.0
  %382 = vmatpush.msra.mxu0 0.0
  %383 = vmatpush.msra.mxu0 0.0
  %384 = vmatpush.msra.mxu0 0.0
  %385 = vmatpush.msra.mxu0 0.0
  %386 = vmatpush.msra.mxu0 0.0
  %387 = vmatpush.msra.mxu0 0.0
  %388 = vmatpush.msra.mxu0 0.0
  %389 = vmatpush.msra.mxu0 0.0
  %390 = vmatpush.msra.mxu0 0.0
  %391 = vmatpush.msra.mxu0 0.0
  %392 = vmatpush.msra.mxu0 0.0
  %393 = vmatpush.msra.mxu0 0.0
  %394 = vmatpush.msra.mxu0 0.0
  %395 = vmatpush.msra.mxu0 0.0
  %396 = vmatpush.msra.mxu0 %v278
  %397 = vmatmul.f32.gmra.mxu0 %v353
  %v398 = vpop.f32.mrf.mxu0
  %v399 = vadd.f32 %v347, %v398
  %400 = vmatmul.f32.gmra.mxu0 %v356
  %v401 = vpop.f32.mrf.mxu0
  %v402 = vadd.f32 %v350, %v401
  %403 = vdwg.mxu0
  %v404 = vld [vmem:[%s1 + $0x38] sm:$0xff]
  %v405 = vld [vmem:[%s1 + $0x40] sm:$0xff]
  %v407 = vsel %vm299, %v404, 0
  %v410 = vsel %vm299, %v405, 0
  %412 = vmatpush.msra.mxu0 0.0
  %413 = vmatpush.msra.mxu0 0.0
  %414 = vmatpush.msra.mxu0 0.0
  %415 = vmatpush.msra.mxu0 0.0
  %416 = vmatpush.msra.mxu0 0.0
  %417 = vmatpush.msra.mxu0 0.0
  %418 = vmatpush.msra.mxu0 0.0
  %419 = vmatpush.msra.mxu0 0.0
  %420 = vmatpush.msra.mxu0 0.0
  %421 = vmatpush.msra.mxu0 0.0
  %422 = vmatpush.msra.mxu0 0.0
  %423 = vmatpush.msra.mxu0 0.0
  %424 = vmatpush.msra.mxu0 0.0
  %425 = vmatpush.msra.mxu0 0.0
  %426 = vmatpush.msra.mxu0 0.0
  %427 = vmatpush.msra.mxu0 %v293
  %428 = vmatmul.f32.gmra.mxu0 %v407
  %v429 = vpop.f32.mrf.mxu0
  %v430 = vadd.f32 0.0, %v429
  %431 = vmatmul.f32.gmra.mxu0 %v410
  %v432 = vpop.f32.mrf.mxu0
  %v433 = vadd.f32 0.0, %v432
  %434 = vdwg.mxu0
  %435 = vmatpush.msra.mxu0 0.0
  %436 = vmatpush.msra.mxu0 0.0
  %437 = vmatpush.msra.mxu0 0.0
  %438 = vmatpush.msra.mxu0 0.0
  %439 = vmatpush.msra.mxu0 0.0
  %440 = vmatpush.msra.mxu0 0.0
  %441 = vmatpush.msra.mxu0 0.0
  %442 = vmatpush.msra.mxu0 0.0
  %443 = vmatpush.msra.mxu0 0.0
  %444 = vmatpush.msra.mxu0 0.0
  %445 = vmatpush.msra.mxu0 0.0
  %446 = vmatpush.msra.mxu0 0.0
  %447 = vmatpush.msra.mxu0 0.0
  %448 = vmatpush.msra.mxu0 0.0
  %449 = vmatpush.msra.mxu0 0.0
  %450 = vmatpush.msra.mxu0 %v294
  %451 = vmatmul.f32.gmra.mxu0 %v407
  %v452 = vpop.f32.mrf.mxu0
  %v453 = vadd.f32 0.0, %v452
  %454 = vmatmul.f32.gmra.mxu0 %v410
  %v455 = vpop.f32.mrf.mxu0
  %v456 = vadd.f32 0.0, %v455
  %457 = vdwg.mxu0
  %v458 = vadd.f32 %v376, %v430
  %v459 = vadd.f32 %v399, %v453
  %v460 = vadd.f32 %v379, %v433
  %v461 = vadd.f32 %v402, %v456
  %v462 = vld [vmem:[%s2] sm:$0xff]
  %v463 = vld [vmem:[%s2 + $0x8] sm:$0xff]
  %v464 = vmul.f32 %v458, %v57
  %v465 = vmul.f32 %v459, %v58
  %v466 = vmul.f32 %v460, %v57
  %v467 = vmul.f32 %v461, %v58
  %v468 = vadd.f32 %v464, %v465
  %469 = vadd.xlane.f32.xlu0 %v468
  %v470 = vpop.xlane.xlu0 %469
  %v471 = vadd.f32 %v466, %v467
  %472 = vadd.xlane.f32.xlu0 %v471
  %v473 = vpop.xlane.xlu0 %472
  %v474 = vmul.f32 %v470, 0.03125
  %v475 = vmul.f32 %v473, 0.03125
  %v476 = vsub.f32 %v464, %v474
  %v477 = vsub.f32 %v465, %v474
  %v478 = vsub.f32 %v466, %v475
  %v479 = vsub.f32 %v467, %v475
  %v480 = vmul.f32 %v476, %v57
  %v481 = vmul.f32 %v477, %v58
  %v482 = vmul.f32 %v478, %v57
  %v483 = vmul.f32 %v479, %v58
  %v484 = vmul.f32 %v480, %v480
  %v485 = vmul.f32 %v481, %v481
  %v486 = vmul.f32 %v482, %v482
  %v487 = vmul.f32 %v483, %v483
  %v488 = vadd.f32 %v484, %v485
  %489 = vadd.xlane.f32.xlu0 %v488
  %v490 = vpop.xlane.xlu0 %489
  %v491 = vadd.f32 %v486, %v487
  %492 = vadd.xlane.f32.xlu0 %v491
  %v493 = vpop.xlane.xlu0 %492
  %v494 = vmul.f32 %v490, 0.03125
  %v495 = vmul.f32 %v493, 0.03125
  %v496 = vadd.f32 %v494, 1e-05
  %v497 = vadd.f32 %v495, 1e-05
  %v498 = vrsqrt.pop %v496
  %v499 = vmul.f32 %v498, %v496
  %v500 = vmul.f32 %v499, %v498
  %v501 = vmul.f32 0.5, %v500
  %v502 = vsub.f32 1.5, %v501
  %v503 = vmul.f32 %v498, %v502
  %vm504 = vweird.f32 %v496
  %vm505 = vweird.f32 %v498
  %vm506 = vmor %vm504, %vm505
  %v507 = vsel %vm506, %v498, %v503
  %v508 = vrsqrt.pop %v497
  %v509 = vmul.f32 %v508, %v497
  %v510 = vmul.f32 %v509, %v508
  %v511 = vmul.f32 0.5, %v510
  %v512 = vsub.f32 1.5, %v511
  %v513 = vmul.f32 %v508, %v512
  %vm514 = vweird.f32 %v497
  %vm515 = vweird.f32 %v508
  %vm516 = vmor %vm514, %vm515
  %v517 = vsel %vm516, %v508, %v513
  %v518 = vmul.f32 %v507, %v462
  %v519 = vmul.f32 %v517, %v463
  %521 = vset.pattern.permute.xlu0 2
  %522 = vperm.xlu0 %521, %v518
  %v523 = vpop.permute.xlu0 %522
  %526 = vset.pattern.permute.xlu0 2
  %527 = vperm.xlu0 %526, %v519
  %v528 = vpop.permute.xlu0 %527
  %v530 = vmul.f32 %v480, %v523
  %v531 = vmul.f32 %v481, %v523
  %v532 = vmul.f32 %v482, %v528
  %v533 = vmul.f32 %v483, %v528
  %535 = vset.pattern.permute.xlu0 3
  %536 = vperm.xlu0 %535, %v462
  %v537 = vpop.permute.xlu0 %536
  %540 = vset.pattern.permute.xlu0 3
  %541 = vperm.xlu0 %540, %v463
  %v542 = vpop.permute.xlu0 %541
  %v544 = vadd.f32 %v530, %v537
  %v545 = vadd.f32 %v531, %v537
  %v546 = vadd.f32 %v532, %v542
  %v547 = vadd.f32 %v533, %v542
  %v548 = vmax.f32 %v544, 0.0
  %v549 = vmax.f32 %v545, 0.0
  %v550 = vmax.f32 %v546, 0.0
  %v551 = vmax.f32 %v547, 0.0
  %552 = vrot.lane.b32.xlu0 %v548, 1
  %v553 = vpop.permute.xlu0 %552
  %554 = vrot.lane.b32.xlu0 %v550, 1
  %v555 = vpop.permute.xlu0 %554
  %556 = vrot.lane.b32.xlu0 %v549, 1
  %v557 = vpop.permute.xlu0 %556
  %558 = vrot.lane.b32.xlu0 %v551, 1
  %v559 = vpop.permute.xlu0 %558
  %v560 = vsel %vm66, %v553, %v557
  %v561 = vsel %vm66, %v555, %v559
  %v562 = vsel %vm66, %v557, %v553
  %v563 = vsel %vm66, %v559, %v555
  %v564 = vmul.f32 %v562, %v45
  %v565 = vmul.f32 %v560, %v46
  %v566 = vmul.f32 %v563, %v45
  %v567 = vmul.f32 %v561, %v46
  %568 = vrot.lane.b32.xlu0 %v548, 127
  %v569 = vpop.permute.xlu0 %568
  %570 = vrot.lane.b32.xlu0 %v550, 127
  %v571 = vpop.permute.xlu0 %570
  %572 = vrot.lane.b32.xlu0 %v549, 127
  %v573 = vpop.permute.xlu0 %572
  %574 = vrot.lane.b32.xlu0 %v551, 127
  %v575 = vpop.permute.xlu0 %574
  %v576 = vsel %vm75, %v569, %v573
  %v577 = vsel %vm75, %v571, %v575
  %v578 = vsel %vm75, %v573, %v569
  %v579 = vsel %vm75, %v575, %v571
  %v580 = vmul.f32 %v576, %v51
  %v581 = vmul.f32 %v578, %v52
  %v582 = vmul.f32 %v577, %v51
  %v583 = vmul.f32 %v579, %v52
  %v584 = vld [vmem:[%s1 + $0x68] sm:$0xff]
  %v585 = vld [vmem:[%s1 + $0x70] sm:$0xff]
  %v586 = vld [vmem:[%s1 + $0x78] sm:$0xff]
  %v587 = vld [vmem:[%s1 + $0x80] sm:$0xff]
  %v588 = vld [vmem:[%s1 + $0x48] sm:$0xff]
  %v589 = vld [vmem:[%s1 + $0x50] sm:$0xff]
  %v590 = vld [vmem:[%s1 + $0x58] sm:$0xff]
  %v591 = vld [vmem:[%s1 + $0x60] sm:$0xff]
  %vm592 = vcmask 130048
  %v594 = vsel %vm592, %v588, 0
  %v597 = vsel %vm592, %v589, 0
  %v600 = vsel %vm592, %v590, 0
  %v603 = vsel %vm592, %v591, 0
  %605 = vmatpush.msra.mxu0 0.0
  %606 = vmatpush.msra.mxu0 0.0
  %607 = vmatpush.msra.mxu0 0.0
  %608 = vmatpush.msra.mxu0 0.0
  %609 = vmatpush.msra.mxu0 0.0
  %610 = vmatpush.msra.mxu0 0.0
  %611 = vmatpush.msra.mxu0 0.0
  %612 = vmatpush.msra.mxu0 0.0
  %613 = vmatpush.msra.mxu0 0.0
  %614 = vmatpush.msra.mxu0 0.0
  %615 = vmatpush.msra.mxu0 0.0
  %616 = vmatpush.msra.mxu0 0.0
  %617 = vmatpush.msra.mxu0 0.0
  %618 = vmatpush.msra.mxu0 0.0
  %619 = vmatpush.msra.mxu0 %v566
  %620 = vmatpush.msra.mxu0 %v564
  %621 = vmatmul.f32.gmra.mxu0 %v594
  %v622 = vpop.f32.mrf.mxu0
  %v623 = vadd.f32 0.0, %v622
  %624 = vmatmul.f32.gmra.mxu0 %v597
  %v625 = vpop.f32.mrf.mxu0
  %v626 = vadd.f32 0.0, %v625
  %627 = vmatmul.f32.gmra.mxu0 %v600
  %v628 = vpop.f32.mrf.mxu0
  %v629 = vadd.f32 0.0, %v628
  %630 = vmatmul.f32.gmra.mxu0 %v603
  %v631 = vpop.f32.mrf.mxu0
  %v632 = vadd.f32 0.0, %v631
  %633 = vdwg.mxu0
  %634 = vmatpush.msra.mxu0 0.0
  %635 = vmatpush.msra.mxu0 0.0
  %636 = vmatpush.msra.mxu0 0.0
  %637 = vmatpush.msra.mxu0 0.0
  %638 = vmatpush.msra.mxu0 0.0
  %639 = vmatpush.msra.mxu0 0.0
  %640 = vmatpush.msra.mxu0 0.0
  %641 = vmatpush.msra.mxu0 0.0
  %642 = vmatpush.msra.mxu0 0.0
  %643 = vmatpush.msra.mxu0 0.0
  %644 = vmatpush.msra.mxu0 0.0
  %645 = vmatpush.msra.mxu0 0.0
  %646 = vmatpush.msra.mxu0 0.0
  %647 = vmatpush.msra.mxu0 0.0
  %648 = vmatpush.msra.mxu0 %v567
  %649 = vmatpush.msra.mxu0 %v565
  %650 = vmatmul.f32.gmra.mxu0 %v594
  %v651 = vpop.f32.mrf.mxu0
  %v652 = vadd.f32 0.0, %v651
  %653 = vmatmul.f32.gmra.mxu0 %v597
  %v654 = vpop.f32.mrf.mxu0
  %v655 = vadd.f32 0.0, %v654
  %656 = vmatmul.f32.gmra.mxu0 %v600
  %v657 = vpop.f32.mrf.mxu0
  %v658 = vadd.f32 0.0, %v657
  %659 = vmatmul.f32.gmra.mxu0 %v603
  %v660 = vpop.f32.mrf.mxu0
  %v661 = vadd.f32 0.0, %v660
  %662 = vdwg.mxu0
  %v664 = vsel %vm592, %v584, 0
  %v667 = vsel %vm592, %v585, 0
  %v670 = vsel %vm592, %v586, 0
  %v673 = vsel %vm592, %v587, 0
  %675 = vmatpush.msra.mxu0 0.0
  %676 = vmatpush.msra.mxu0 0.0
  %677 = vmatpush.msra.mxu0 0.0
  %678 = vmatpush.msra.mxu0 0.0
  %679 = vmatpush.msra.mxu0 0.0
  %680 = vmatpush.msra.mxu0 0.0
  %681 = vmatpush.msra.mxu0 0.0
  %682 = vmatpush.msra.mxu0 0.0
  %683 = vmatpush.msra.mxu0 0.0
  %684 = vmatpush.msra.mxu0 0.0
  %685 = vmatpush.msra.mxu0 0.0
  %686 = vmatpush.msra.mxu0 0.0
  %687 = vmatpush.msra.mxu0 0.0
  %688 = vmatpush.msra.mxu0 0.0
  %689 = vmatpush.msra.mxu0 %v550
  %690 = vmatpush.msra.mxu0 %v548
  %691 = vmatmul.f32.gmra.mxu0 %v664
  %v692 = vpop.f32.mrf.mxu0
  %v693 = vadd.f32 %v623, %v692
  %694 = vmatmul.f32.gmra.mxu0 %v667
  %v695 = vpop.f32.mrf.mxu0
  %v696 = vadd.f32 %v626, %v695
  %697 = vmatmul.f32.gmra.mxu0 %v670
  %v698 = vpop.f32.mrf.mxu0
  %v699 = vadd.f32 %v629, %v698
  %700 = vmatmul.f32.gmra.mxu0 %v673
  %v701 = vpop.f32.mrf.mxu0
  %v702 = vadd.f32 %v632, %v701
  %703 = vdwg.mxu0
  %704 = vmatpush.msra.mxu0 0.0
  %705 = vmatpush.msra.mxu0 0.0
  %706 = vmatpush.msra.mxu0 0.0
  %707 = vmatpush.msra.mxu0 0.0
  %708 = vmatpush.msra.mxu0 0.0
  %709 = vmatpush.msra.mxu0 0.0
  %710 = vmatpush.msra.mxu0 0.0
  %711 = vmatpush.msra.mxu0 0.0
  %712 = vmatpush.msra.mxu0 0.0
  %713 = vmatpush.msra.mxu0 0.0
  %714 = vmatpush.msra.mxu0 0.0
  %715 = vmatpush.msra.mxu0 0.0
  %716 = vmatpush.msra.mxu0 0.0
  %717 = vmatpush.msra.mxu0 0.0
  %718 = vmatpush.msra.mxu0 %v551
  %719 = vmatpush.msra.mxu0 %v549
  %720 = vmatmul.f32.gmra.mxu0 %v664
  %v721 = vpop.f32.mrf.mxu0
  %v722 = vadd.f32 %v652, %v721
  %723 = vmatmul.f32.gmra.mxu0 %v667
  %v724 = vpop.f32.mrf.mxu0
  %v725 = vadd.f32 %v655, %v724
  %726 = vmatmul.f32.gmra.mxu0 %v670
  %v727 = vpop.f32.mrf.mxu0
  %v728 = vadd.f32 %v658, %v727
  %729 = vmatmul.f32.gmra.mxu0 %v673
  %v730 = vpop.f32.mrf.mxu0
  %v731 = vadd.f32 %v661, %v730
  %732 = vdwg.mxu0
  %v733 = vld [vmem:[%s1 + $0x88] sm:$0xff]
  %v734 = vld [vmem:[%s1 + $0x90] sm:$0xff]
  %v735 = vld [vmem:[%s1 + $0x98] sm:$0xff]
  %v736 = vld [vmem:[%s1 + $0xa0] sm:$0xff]
  %v738 = vsel %vm592, %v733, 0
  %v741 = vsel %vm592, %v734, 0
  %v744 = vsel %vm592, %v735, 0
  %v747 = vsel %vm592, %v736, 0
  %749 = vmatpush.msra.mxu0 0.0
  %750 = vmatpush.msra.mxu0 0.0
  %751 = vmatpush.msra.mxu0 0.0
  %752 = vmatpush.msra.mxu0 0.0
  %753 = vmatpush.msra.mxu0 0.0
  %754 = vmatpush.msra.mxu0 0.0
  %755 = vmatpush.msra.mxu0 0.0
  %756 = vmatpush.msra.mxu0 0.0
  %757 = vmatpush.msra.mxu0 0.0
  %758 = vmatpush.msra.mxu0 0.0
  %759 = vmatpush.msra.mxu0 0.0
  %760 = vmatpush.msra.mxu0 0.0
  %761 = vmatpush.msra.mxu0 0.0
  %762 = vmatpush.msra.mxu0 0.0
  %763 = vmatpush.msra.mxu0 %v582
  %764 = vmatpush.msra.mxu0 %v580
  %765 = vmatmul.f32.gmra.mxu0 %v738
  %v766 = vpop.f32.mrf.mxu0
  %v767 = vadd.f32 0.0, %v766
  %768 = vmatmul.f32.gmra.mxu0 %v741
  %v769 = vpop.f32.mrf.mxu0
  %v770 = vadd.f32 0.0, %v769
  %771 = vmatmul.f32.gmra.mxu0 %v744
  %v772 = vpop.f32.mrf.mxu0
  %v773 = vadd.f32 0.0, %v772
  %774 = vmatmul.f32.gmra.mxu0 %v747
  %v775 = vpop.f32.mrf.mxu0
  %v776 = vadd.f32 0.0, %v775
  %777 = vdwg.mxu0
  %778 = vmatpush.msra.mxu0 0.0
  %779 = vmatpush.msra.mxu0 0.0
  %780 = vmatpush.msra.mxu0 0.0
  %781 = vmatpush.msra.mxu0 0.0
  %782 = vmatpush.msra.mxu0 0.0
  %783 = vmatpush.msra.mxu0 0.0
  %784 = vmatpush.msra.mxu0 0.0
  %785 = vmatpush.msra.mxu0 0.0
  %786 = vmatpush.msra.mxu0 0.0
  %787 = vmatpush.msra.mxu0 0.0
  %788 = vmatpush.msra.mxu0 0.0
  %789 = vmatpush.msra.mxu0 0.0
  %790 = vmatpush.msra.mxu0 0.0
  %791 = vmatpush.msra.mxu0 0.0
  %792 = vmatpush.msra.mxu0 %v583
  %793 = vmatpush.msra.mxu0 %v581
  %794 = vmatmul.f32.gmra.mxu0 %v738
  %v795 = vpop.f32.mrf.mxu0
  %v796 = vadd.f32 0.0, %v795
  %797 = vmatmul.f32.gmra.mxu0 %v741
  %v798 = vpop.f32.mrf.mxu0
  %v799 = vadd.f32 0.0, %v798
  %800 = vmatmul.f32.gmra.mxu0 %v744
  %v801 = vpop.f32.mrf.mxu0
  %v802 = vadd.f32 0.0, %v801
  %803 = vmatmul.f32.gmra.mxu0 %v747
  %v804 = vpop.f32.mrf.mxu0
  %v805 = vadd.f32 0.0, %v804
  %806 = vdwg.mxu0
  %v807 = vadd.f32 %v693, %v767
  %v808 = vadd.f32 %v722, %v796
  %v809 = vadd.f32 %v696, %v770
  %v810 = vadd.f32 %v725, %v799
  %v811 = vadd.f32 %v699, %v773
  %v812 = vadd.f32 %v728, %v802
  %v813 = vadd.f32 %v702, %v776
  %v814 = vadd.f32 %v731, %v805
  %v815 = vld [vmem:[%s2] sm:$0xff]
  %v816 = vld [vmem:[%s2 + $0x8] sm:$0xff]
  %v817 = vld [vmem:[%s2 + $0x10] sm:$0xff]
  %v818 = vld [vmem:[%s2 + $0x18] sm:$0xff]
  %v819 = vmul.f32 %v807, %v57
  %v820 = vmul.f32 %v808, %v58
  %v821 = vmul.f32 %v809, %v57
  %v822 = vmul.f32 %v810, %v58
  %v823 = vmul.f32 %v811, %v57
  %v824 = vmul.f32 %v812, %v58
  %v825 = vmul.f32 %v813, %v57
  %v826 = vmul.f32 %v814, %v58
  %v827 = vadd.f32 %v819, %v820
  %828 = vadd.xlane.f32.xlu0 %v827
  %v829 = vpop.xlane.xlu0 %828
  %v830 = vadd.f32 %v821, %v822
  %831 = vadd.xlane.f32.xlu0 %v830
  %v832 = vpop.xlane.xlu0 %831
  %v833 = vadd.f32 %v823, %v824
  %834 = vadd.xlane.f32.xlu0 %v833
  %v835 = vpop.xlane.xlu0 %834
  %v836 = vadd.f32 %v825, %v826
  %837 = vadd.xlane.f32.xlu0 %v836
  %v838 = vpop.xlane.xlu0 %837
  %v839 = vmul.f32 %v829, 0.03125
  %v840 = vmul.f32 %v832, 0.03125
  %v841 = vmul.f32 %v835, 0.03125
  %v842 = vmul.f32 %v838, 0.03125
  %v843 = vsub.f32 %v819, %v839
  %v844 = vsub.f32 %v820, %v839
  %v845 = vsub.f32 %v821, %v840
  %v846 = vsub.f32 %v822, %v840
  %v847 = vsub.f32 %v823, %v841
  %v848 = vsub.f32 %v824, %v841
  %v849 = vsub.f32 %v825, %v842
  %v850 = vsub.f32 %v826, %v842
  %v851 = vmul.f32 %v843, %v57
  %v852 = vmul.f32 %v844, %v58
  %v853 = vmul.f32 %v845, %v57
  %v854 = vmul.f32 %v846, %v58
  %v855 = vmul.f32 %v847, %v57
  %v856 = vmul.f32 %v848, %v58
  %v857 = vmul.f32 %v849, %v57
  %v858 = vmul.f32 %v850, %v58
  %v859 = vmul.f32 %v851, %v851
  %v860 = vmul.f32 %v852, %v852
  %v861 = vmul.f32 %v853, %v853
  %v862 = vmul.f32 %v854, %v854
  %v863 = vmul.f32 %v855, %v855
  %v864 = vmul.f32 %v856, %v856
  %v865 = vmul.f32 %v857, %v857
  %v866 = vmul.f32 %v858, %v858
  %v867 = vadd.f32 %v859, %v860
  %868 = vadd.xlane.f32.xlu0 %v867
  %v869 = vpop.xlane.xlu0 %868
  %v870 = vadd.f32 %v861, %v862
  %871 = vadd.xlane.f32.xlu0 %v870
  %v872 = vpop.xlane.xlu0 %871
  %v873 = vadd.f32 %v863, %v864
  %874 = vadd.xlane.f32.xlu0 %v873
  %v875 = vpop.xlane.xlu0 %874
  %v876 = vadd.f32 %v865, %v866
  %877 = vadd.xlane.f32.xlu0 %v876
  %v878 = vpop.xlane.xlu0 %877
  %v879 = vmul.f32 %v869, 0.03125
  %v880 = vmul.f32 %v872, 0.03125
  %v881 = vmul.f32 %v875, 0.03125
  %v882 = vmul.f32 %v878, 0.03125
  %v883 = vadd.f32 %v879, 1e-05
  %v884 = vadd.f32 %v880, 1e-05
  %v885 = vadd.f32 %v881, 1e-05
  %v886 = vadd.f32 %v882, 1e-05
  %v887 = vrsqrt.pop %v883
  %v888 = vmul.f32 %v887, %v883
  %v889 = vmul.f32 %v888, %v887
  %v890 = vmul.f32 0.5, %v889
  %v891 = vsub.f32 1.5, %v890
  %v892 = vmul.f32 %v887, %v891
  %vm893 = vweird.f32 %v883
  %vm894 = vweird.f32 %v887
  %vm895 = vmor %vm893, %vm894
  %v896 = vsel %vm895, %v887, %v892
  %v897 = vrsqrt.pop %v884
  %v898 = vmul.f32 %v897, %v884
  %v899 = vmul.f32 %v898, %v897
  %v900 = vmul.f32 0.5, %v899
  %v901 = vsub.f32 1.5, %v900
  %v902 = vmul.f32 %v897, %v901
  %vm903 = vweird.f32 %v884
  %vm904 = vweird.f32 %v897
  %vm905 = vmor %vm903, %vm904
  %v906 = vsel %vm905, %v897, %v902
  %v907 = vrsqrt.pop %v885
  %v908 = vmul.f32 %v907, %v885
  %v909 = vmul.f32 %v908, %v907
  %v910 = vmul.f32 0.5, %v909
  %v911 = vsub.f32 1.5, %v910
  %v912 = vmul.f32 %v907, %v911
  %vm913 = vweird.f32 %v885
  %vm914 = vweird.f32 %v907
  %vm915 = vmor %vm913, %vm914
  %v916 = vsel %vm915, %v907, %v912
  %v917 = vrsqrt.pop %v886
  %v918 = vmul.f32 %v917, %v886
  %v919 = vmul.f32 %v918, %v917
  %v920 = vmul.f32 0.5, %v919
  %v921 = vsub.f32 1.5, %v920
  %v922 = vmul.f32 %v917, %v921
  %vm923 = vweird.f32 %v886
  %vm924 = vweird.f32 %v917
  %vm925 = vmor %vm923, %vm924
  %v926 = vsel %vm925, %v917, %v922
  %v927 = vmul.f32 %v896, %v815
  %v928 = vmul.f32 %v906, %v816
  %v929 = vmul.f32 %v916, %v817
  %v930 = vmul.f32 %v926, %v818
  %932 = vset.pattern.permute.xlu0 4
  %933 = vperm.xlu0 %932, %v927
  %v934 = vpop.permute.xlu0 %933
  %937 = vset.pattern.permute.xlu0 4
  %938 = vperm.xlu0 %937, %v928
  %v939 = vpop.permute.xlu0 %938
  %942 = vset.pattern.permute.xlu0 4
  %943 = vperm.xlu0 %942, %v929
  %v944 = vpop.permute.xlu0 %943
  %947 = vset.pattern.permute.xlu0 4
  %948 = vperm.xlu0 %947, %v930
  %v949 = vpop.permute.xlu0 %948
  %v951 = vmul.f32 %v851, %v934
  %v952 = vmul.f32 %v852, %v934
  %v953 = vmul.f32 %v853, %v939
  %v954 = vmul.f32 %v854, %v939
  %v955 = vmul.f32 %v855, %v944
  %v956 = vmul.f32 %v856, %v944
  %v957 = vmul.f32 %v857, %v949
  %v958 = vmul.f32 %v858, %v949
  %960 = vset.pattern.permute.xlu0 5
  %961 = vperm.xlu0 %960, %v815
  %v962 = vpop.permute.xlu0 %961
  %965 = vset.pattern.permute.xlu0 5
  %966 = vperm.xlu0 %965, %v816
  %v967 = vpop.permute.xlu0 %966
  %970 = vset.pattern.permute.xlu0 5
  %971 = vperm.xlu0 %970, %v817
  %v972 = vpop.permute.xlu0 %971
  %975 = vset.pattern.permute.xlu0 5
  %976 = vperm.xlu0 %975, %v818
  %v977 = vpop.permute.xlu0 %976
  %v979 = vadd.f32 %v951, %v962
  %v980 = vadd.f32 %v952, %v962
  %v981 = vadd.f32 %v953, %v967
  %v982 = vadd.f32 %v954, %v967
  %v983 = vadd.f32 %v955, %v972
  %v984 = vadd.f32 %v956, %v972
  %v985 = vadd.f32 %v957, %v977
  %v986 = vadd.f32 %v958, %v977
  %v987 = vmax.f32 %v979, 0.0
  %v988 = vmax.f32 %v980, 0.0
  %v989 = vmax.f32 %v981, 0.0
  %v990 = vmax.f32 %v982, 0.0
  %v991 = vmax.f32 %v983, 0.0
  %v992 = vmax.f32 %v984, 0.0
  %v993 = vmax.f32 %v985, 0.0
  %v994 = vmax.f32 %v986, 0.0
  %995 = vrot.lane.b32.xlu0 %v987, 1
  %v996 = vpop.permute.xlu0 %995
  %997 = vrot.lane.b32.xlu0 %v989, 1
  %v998 = vpop.permute.xlu0 %997
  %999 = vrot.lane.b32.xlu0 %v991, 1
  %v1000 = vpop.permute.xlu0 %999
  %1001 = vrot.lane.b32.xlu0 %v993, 1
  %v1002 = vpop.permute.xlu0 %1001
  %1003 = vrot.lane.b32.xlu0 %v988, 1
  %v1004 = vpop.permute.xlu0 %1003
  %1005 = vrot.lane.b32.xlu0 %v990, 1
  %v1006 = vpop.permute.xlu0 %1005
  %1007 = vrot.lane.b32.xlu0 %v992, 1
  %v1008 = vpop.permute.xlu0 %1007
  %1009 = vrot.lane.b32.xlu0 %v994, 1
  %v1010 = vpop.permute.xlu0 %1009
  %v1011 = vsel %vm66, %v996, %v1004
  %v1012 = vsel %vm66, %v998, %v1006
  %v1013 = vsel %vm66, %v1000, %v1008
  %v1014 = vsel %vm66, %v1002, %v1010
  %v1015 = vsel %vm66, %v1004, %v996
  %v1016 = vsel %vm66, %v1006, %v998
  %v1017 = vsel %vm66, %v1008, %v1000
  %v1018 = vsel %vm66, %v1010, %v1002
  %v1019 = vmul.f32 %v1015, %v45
  %v1020 = vmul.f32 %v1011, %v46
  %v1021 = vmul.f32 %v1016, %v45
  %v1022 = vmul.f32 %v1012, %v46
  %v1023 = vmul.f32 %v1017, %v45
  %v1024 = vmul.f32 %v1013, %v46
  %v1025 = vmul.f32 %v1018, %v45
  %v1026 = vmul.f32 %v1014, %v46
  %1027 = vrot.lane.b32.xlu0 %v987, 127
  %v1028 = vpop.permute.xlu0 %1027
  %1029 = vrot.lane.b32.xlu0 %v989, 127
  %v1030 = vpop.permute.xlu0 %1029
  %1031 = vrot.lane.b32.xlu0 %v991, 127
  %v1032 = vpop.permute.xlu0 %1031
  %1033 = vrot.lane.b32.xlu0 %v993, 127
  %v1034 = vpop.permute.xlu0 %1033
  %1035 = vrot.lane.b32.xlu0 %v988, 127
  %v1036 = vpop.permute.xlu0 %1035
  %1037 = vrot.lane.b32.xlu0 %v990, 127
  %v1038 = vpop.permute.xlu0 %1037
  %1039 = vrot.lane.b32.xlu0 %v992, 127
  %v1040 = vpop.permute.xlu0 %1039
  %1041 = vrot.lane.b32.xlu0 %v994, 127
  %v1042 = vpop.permute.xlu0 %1041
  %v1043 = vsel %vm75, %v1028, %v1036
  %v1044 = vsel %vm75, %v1030, %v1038
  %v1045 = vsel %vm75, %v1032, %v1040
  %v1046 = vsel %vm75, %v1034, %v1042
  %v1047 = vsel %vm75, %v1036, %v1028
  %v1048 = vsel %vm75, %v1038, %v1030
  %v1049 = vsel %vm75, %v1040, %v1032
  %v1050 = vsel %vm75, %v1042, %v1034
  %v1051 = vmul.f32 %v1043, %v51
  %v1052 = vmul.f32 %v1047, %v52
  %v1053 = vmul.f32 %v1044, %v51
  %v1054 = vmul.f32 %v1048, %v52
  %v1055 = vmul.f32 %v1045, %v51
  %v1056 = vmul.f32 %v1049, %v52
  %v1057 = vmul.f32 %v1046, %v51
  %v1058 = vmul.f32 %v1050, %v52
  %v1059 = vld [vmem:[%s1 + $0xb8] sm:$0xff]
  %v1060 = vld [vmem:[%s1 + $0xc0] sm:$0xff]
  %v1061 = vld [vmem:[%s1 + $0xa8] sm:$0xff]
  %v1062 = vld [vmem:[%s1 + $0xb0] sm:$0xff]
  %vm1063 = vcmask 261120
  %v1065 = vsel %vm1063, %v1061, 0
  %v1068 = vsel %vm1063, %v1062, 0
  %1070 = vmatpush.msra.mxu0 0.0
  %1071 = vmatpush.msra.mxu0 0.0
  %1072 = vmatpush.msra.mxu0 0.0
  %1073 = vmatpush.msra.mxu0 0.0
  %1074 = vmatpush.msra.mxu0 0.0
  %1075 = vmatpush.msra.mxu0 0.0
  %1076 = vmatpush.msra.mxu0 0.0
  %1077 = vmatpush.msra.mxu0 0.0
  %1078 = vmatpush.msra.mxu0 0.0
  %1079 = vmatpush.msra.mxu0 0.0
  %1080 = vmatpush.msra.mxu0 0.0
  %1081 = vmatpush.msra.mxu0 0.0
  %1082 = vmatpush.msra.mxu0 %v1025
  %1083 = vmatpush.msra.mxu0 %v1023
  %1084 = vmatpush.msra.mxu0 %v1021
  %1085 = vmatpush.msra.mxu0 %v1019
  %1086 = vmatmul.f32.gmra.mxu0 %v1065
  %v1087 = vpop.f32.mrf.mxu0
  %v1088 = vadd.f32 0.0, %v1087
  %1089 = vmatmul.f32.gmra.mxu0 %v1068
  %v1090 = vpop.f32.mrf.mxu0
  %v1091 = vadd.f32 0.0, %v1090
  %1092 = vdwg.mxu0
  %1093 = vmatpush.msra.mxu0 0.0
  %1094 = vmatpush.msra.mxu0 0.0
  %1095 = vmatpush.msra.mxu0 0.0
  %1096 = vmatpush.msra.mxu0 0.0
  %1097 = vmatpush.msra.mxu0 0.0
  %1098 = vmatpush.msra.mxu0 0.0
  %1099 = vmatpush.msra.mxu0 0.0
  %1100 = vmatpush.msra.mxu0 0.0
  %1101 = vmatpush.msra.mxu0 0.0
  %1102 = vmatpush.msra.mxu0 0.0
  %1103 = vmatpush.msra.mxu0 0.0
  %1104 = vmatpush.msra.mxu0 0.0
  %1105 = vmatpush.msra.mxu0 %v1026
  %1106 = vmatpush.msra.mxu0 %v1024
  %1107 = vmatpush.msra.mxu0 %v1022
  %1108 = vmatpush.msra.mxu0 %v1020
  %1109 = vmatmul.f32.gmra.mxu0 %v1065
  %v1110 = vpop.f32.mrf.mxu0
  %v1111 = vadd.f32 0.0, %v1110
  %1112 = vmatmul.f32.gmra.mxu0 %v1068
  %v1113 = vpop.f32.mrf.mxu0
  %v1114 = vadd.f32 0.0, %v1113
  %1115 = vdwg.mxu0
  %v1117 = vsel %vm1063, %v1059, 0
  %v1120 = vsel %vm1063, %v1060, 0
  %1122 = vmatpush.msra.mxu0 0.0
  %1123 = vmatpush.msra.mxu0 0.0
  %1124 = vmatpush.msra.mxu0 0.0
  %1125 = vmatpush.msra.mxu0 0.0
  %1126 = vmatpush.msra.mxu0 0.0
  %1127 = vmatpush.msra.mxu0 0.0
  %1128 = vmatpush.msra.mxu0 0.0
  %1129 = vmatpush.msra.mxu0 0.0
  %1130 = vmatpush.msra.mxu0 0.0
  %1131 = vmatpush.msra.mxu0 0.0
  %1132 = vmatpush.msra.mxu0 0.0
  %1133 = vmatpush.msra.mxu0 0.0
  %1134 = vmatpush.msra.mxu0 %v993
  %1135 = vmatpush.msra.mxu0 %v991
  %1136 = vmatpush.msra.mxu0 %v989
  %1137 = vmatpush.msra.mxu0 %v987
  %1138 = vmatmul.f32.gmra.mxu0 %v1117
  %v1139 = vpop.f32.mrf.mxu0
  %v1140 = vadd.f32 %v1088, %v1139
  %1141 = vmatmul.f32.gmra.mxu0 %v1120
  %v1142 = vpop.f32.mrf.mxu0
  %v1143 = vadd.f32 %v1091, %v1142
  %1144 = vdwg.mxu0
  %1145 = vmatpush.msra.mxu0 0.0
  %1146 = vmatpush.msra.mxu0 0.0
  %1147 = vmatpush.msra.mxu0 0.0
  %1148 = vmatpush.msra.mxu0 0.0
  %1149 = vmatpush.msra.mxu0 0.0
  %1150 = vmatpush.msra.mxu0 0.0
  %1151 = vmatpush.msra.mxu0 0.0
  %1152 = vmatpush.msra.mxu0 0.0
  %1153 = vmatpush.msra.mxu0 0.0
  %1154 = vmatpush.msra.mxu0 0.0
  %1155 = vmatpush.msra.mxu0 0.0
  %1156 = vmatpush.msra.mxu0 0.0
  %1157 = vmatpush.msra.mxu0 %v994
  %1158 = vmatpush.msra.mxu0 %v992
  %1159 = vmatpush.msra.mxu0 %v990
  %1160 = vmatpush.msra.mxu0 %v988
  %1161 = vmatmul.f32.gmra.mxu0 %v1117
  %v1162 = vpop.f32.mrf.mxu0
  %v1163 = vadd.f32 %v1111, %v1162
  %1164 = vmatmul.f32.gmra.mxu0 %v1120
  %v1165 = vpop.f32.mrf.mxu0
  %v1166 = vadd.f32 %v1114, %v1165
  %1167 = vdwg.mxu0
  %v1168 = vld [vmem:[%s1 + $0xc8] sm:$0xff]
  %v1169 = vld [vmem:[%s1 + $0xd0] sm:$0xff]
  %v1171 = vsel %vm1063, %v1168, 0
  %v1174 = vsel %vm1063, %v1169, 0
  %1176 = vmatpush.msra.mxu0 0.0
  %1177 = vmatpush.msra.mxu0 0.0
  %1178 = vmatpush.msra.mxu0 0.0
  %1179 = vmatpush.msra.mxu0 0.0
  %1180 = vmatpush.msra.mxu0 0.0
  %1181 = vmatpush.msra.mxu0 0.0
  %1182 = vmatpush.msra.mxu0 0.0
  %1183 = vmatpush.msra.mxu0 0.0
  %1184 = vmatpush.msra.mxu0 0.0
  %1185 = vmatpush.msra.mxu0 0.0
  %1186 = vmatpush.msra.mxu0 0.0
  %1187 = vmatpush.msra.mxu0 0.0
  %1188 = vmatpush.msra.mxu0 %v1057
  %1189 = vmatpush.msra.mxu0 %v1055
  %1190 = vmatpush.msra.mxu0 %v1053
  %1191 = vmatpush.msra.mxu0 %v1051
  %1192 = vmatmul.f32.gmra.mxu0 %v1171
  %v1193 = vpop.f32.mrf.mxu0
  %v1194 = vadd.f32 0.0, %v1193
  %1195 = vmatmul.f32.gmra.mxu0 %v1174
  %v1196 = vpop.f32.mrf.mxu0
  %v1197 = vadd.f32 0.0, %v1196
  %1198 = vdwg.mxu0
  %1199 = vmatpush.msra.mxu0 0.0
  %1200 = vmatpush.msra.mxu0 0.0
  %1201 = vmatpush.msra.mxu0 0.0
  %1202 = vmatpush.msra.mxu0 0.0
  %1203 = vmatpush.msra.mxu0 0.0
  %1204 = vmatpush.msra.mxu0 0.0
  %1205 = vmatpush.msra.mxu0 0.0
  %1206 = vmatpush.msra.mxu0 0.0
  %1207 = vmatpush.msra.mxu0 0.0
  %1208 = vmatpush.msra.mxu0 0.0
  %1209 = vmatpush.msra.mxu0 0.0
  %1210 = vmatpush.msra.mxu0 0.0
  %1211 = vmatpush.msra.mxu0 %v1058
  %1212 = vmatpush.msra.mxu0 %v1056
  %1213 = vmatpush.msra.mxu0 %v1054
  %1214 = vmatpush.msra.mxu0 %v1052
  %1215 = vmatmul.f32.gmra.mxu0 %v1171
  %v1216 = vpop.f32.mrf.mxu0
  %v1217 = vadd.f32 0.0, %v1216
  %1218 = vmatmul.f32.gmra.mxu0 %v1174
  %v1219 = vpop.f32.mrf.mxu0
  %v1220 = vadd.f32 0.0, %v1219
  %1221 = vdwg.mxu0
  %v1222 = vadd.f32 %v1140, %v1194
  %v1223 = vadd.f32 %v1163, %v1217
  %v1224 = vadd.f32 %v1143, %v1197
  %v1225 = vadd.f32 %v1166, %v1220
  %v1226 = vmul.f32 %v1222, %v57
  %v1227 = vmul.f32 %v1223, %v58
  %v1228 = vmul.f32 %v1224, %v57
  %v1229 = vmul.f32 %v1225, %v58
  %v1230 = vadd.f32 %v1226, %v1227
  %1231 = vadd.xlane.f32.xlu0 %v1230
  %v1232 = vpop.xlane.xlu0 %1231
  %v1233 = vadd.f32 %v1228, %v1229
  %1234 = vadd.xlane.f32.xlu0 %v1233
  %v1235 = vpop.xlane.xlu0 %1234
  %v1236 = vmul.f32 %v1232, 0.03125
  %v1237 = vmul.f32 %v1235, 0.03125
  %v1238 = vsub.f32 %v1226, %v1236
  %v1239 = vsub.f32 %v1227, %v1236
  %v1240 = vsub.f32 %v1228, %v1237
  %v1241 = vsub.f32 %v1229, %v1237
  %v1242 = vmul.f32 %v1238, %v57
  %v1243 = vmul.f32 %v1239, %v58
  %v1244 = vmul.f32 %v1240, %v57
  %v1245 = vmul.f32 %v1241, %v58
  %v1246 = vmul.f32 %v1242, %v1242
  %v1247 = vmul.f32 %v1243, %v1243
  %v1248 = vmul.f32 %v1244, %v1244
  %v1249 = vmul.f32 %v1245, %v1245
  %v1250 = vadd.f32 %v1246, %v1247
  %1251 = vadd.xlane.f32.xlu0 %v1250
  %v1252 = vpop.xlane.xlu0 %1251
  %v1253 = vadd.f32 %v1248, %v1249
  %1254 = vadd.xlane.f32.xlu0 %v1253
  %v1255 = vpop.xlane.xlu0 %1254
  %v1256 = vmul.f32 %v1252, 0.03125
  %v1257 = vmul.f32 %v1255, 0.03125
  %v1258 = vadd.f32 %v1256, 1e-05
  %v1259 = vadd.f32 %v1257, 1e-05
  %v1260 = vrsqrt.pop %v1258
  %v1261 = vmul.f32 %v1260, %v1258
  %v1262 = vmul.f32 %v1261, %v1260
  %v1263 = vmul.f32 0.5, %v1262
  %v1264 = vsub.f32 1.5, %v1263
  %v1265 = vmul.f32 %v1260, %v1264
  %vm1266 = vweird.f32 %v1258
  %vm1267 = vweird.f32 %v1260
  %vm1268 = vmor %vm1266, %vm1267
  %v1269 = vsel %vm1268, %v1260, %v1265
  %v1270 = vrsqrt.pop %v1259
  %v1271 = vmul.f32 %v1270, %v1259
  %v1272 = vmul.f32 %v1271, %v1270
  %v1273 = vmul.f32 0.5, %v1272
  %v1274 = vsub.f32 1.5, %v1273
  %v1275 = vmul.f32 %v1270, %v1274
  %vm1276 = vweird.f32 %v1259
  %vm1277 = vweird.f32 %v1270
  %vm1278 = vmor %vm1276, %vm1277
  %v1279 = vsel %vm1278, %v1270, %v1275
  %v1280 = vmul.f32 %v1269, %v462
  %v1281 = vmul.f32 %v1279, %v463
  %1283 = vset.pattern.permute.xlu0 6
  %1284 = vperm.xlu0 %1283, %v1280
  %v1285 = vpop.permute.xlu0 %1284
  %1288 = vset.pattern.permute.xlu0 6
  %1289 = vperm.xlu0 %1288, %v1281
  %v1290 = vpop.permute.xlu0 %1289
  %v1292 = vmul.f32 %v1242, %v1285
  %v1293 = vmul.f32 %v1243, %v1285
  %v1294 = vmul.f32 %v1244, %v1290
  %v1295 = vmul.f32 %v1245, %v1290
  %1296 = vset.pattern.permute.xlu0 7
  %1297 = vperm.xlu0 %1296, %v462
  %v1298 = vpop.permute.xlu0 %1297
  %1300 = vset.pattern.permute.xlu0 7
  %1301 = vperm.xlu0 %1300, %v463
  %v1302 = vpop.permute.xlu0 %1301
  %v1304 = vadd.f32 %v1292, %v1298
  %v1305 = vadd.f32 %v1293, %v1298
  %v1306 = vadd.f32 %v1294, %v1302
  %v1307 = vadd.f32 %v1295, %v1302
  %v1308 = vmax.f32 %v1304, 0.0
  %v1309 = vmax.f32 %v1305, 0.0
  %v1310 = vmax.f32 %v1306, 0.0
  %v1311 = vmax.f32 %v1307, 0.0
  %1312 = vrot.lane.b32.xlu0 %v1308, 1
  %v1313 = vpop.permute.xlu0 %1312
  %1314 = vrot.lane.b32.xlu0 %v1310, 1
  %v1315 = vpop.permute.xlu0 %1314
  %1316 = vrot.lane.b32.xlu0 %v1309, 1
  %v1317 = vpop.permute.xlu0 %1316
  %1318 = vrot.lane.b32.xlu0 %v1311, 1
  %v1319 = vpop.permute.xlu0 %1318
  %v1320 = vsel %vm66, %v1313, %v1317
  %v1321 = vsel %vm66, %v1315, %v1319
  %v1322 = vsel %vm66, %v1317, %v1313
  %v1323 = vsel %vm66, %v1319, %v1315
  %v1324 = vmul.f32 %v1322, %v45
  %v1325 = vmul.f32 %v1320, %v46
  %v1326 = vmul.f32 %v1323, %v45
  %v1327 = vmul.f32 %v1321, %v46
  %1328 = vrot.lane.b32.xlu0 %v1308, 127
  %v1329 = vpop.permute.xlu0 %1328
  %1330 = vrot.lane.b32.xlu0 %v1310, 127
  %v1331 = vpop.permute.xlu0 %1330
  %1332 = vrot.lane.b32.xlu0 %v1309, 127
  %v1333 = vpop.permute.xlu0 %1332
  %1334 = vrot.lane.b32.xlu0 %v1311, 127
  %v1335 = vpop.permute.xlu0 %1334
  %v1336 = vsel %vm75, %v1329, %v1333
  %v1337 = vsel %vm75, %v1331, %v1335
  %v1338 = vsel %vm75, %v1333, %v1329
  %v1339 = vsel %vm75, %v1335, %v1331
  %v1340 = vmul.f32 %v1336, %v51
  %v1341 = vmul.f32 %v1338, %v52
  %v1342 = vmul.f32 %v1337, %v51
  %v1343 = vmul.f32 %v1339, %v52
  %v1344 = vld [vmem:[%s1 + $0xe0] sm:$0xff]
  %v1345 = vld [vmem:[%s1 + $0xd8] sm:$0xff]
  %v1347 = vsel %vm592, %v1345, 0
  %1349 = vmatpush.msra.mxu0 0.0
  %1350 = vmatpush.msra.mxu0 0.0
  %1351 = vmatpush.msra.mxu0 0.0
  %1352 = vmatpush.msra.mxu0 0.0
  %1353 = vmatpush.msra.mxu0 0.0
  %1354 = vmatpush.msra.mxu0 0.0
  %1355 = vmatpush.msra.mxu0 0.0
  %1356 = vmatpush.msra.mxu0 0.0
  %1357 = vmatpush.msra.mxu0 0.0
  %1358 = vmatpush.msra.mxu0 0.0
  %1359 = vmatpush.msra.mxu0 0.0
  %1360 = vmatpush.msra.mxu0 0.0
  %1361 = vmatpush.msra.mxu0 0.0
  %1362 = vmatpush.msra.mxu0 0.0
  %1363 = vmatpush.msra.mxu0 %v1326
  %1364 = vmatpush.msra.mxu0 %v1324
  %1365 = vmatmul.f32.gmra.mxu0 %v1347
  %v1366 = vpop.f32.mrf.mxu0
  %v1367 = vadd.f32 0.0, %v1366
  %1368 = vdwg.mxu0
  %1369 = vmatpush.msra.mxu0 0.0
  %1370 = vmatpush.msra.mxu0 0.0
  %1371 = vmatpush.msra.mxu0 0.0
  %1372 = vmatpush.msra.mxu0 0.0
  %1373 = vmatpush.msra.mxu0 0.0
  %1374 = vmatpush.msra.mxu0 0.0
  %1375 = vmatpush.msra.mxu0 0.0
  %1376 = vmatpush.msra.mxu0 0.0
  %1377 = vmatpush.msra.mxu0 0.0
  %1378 = vmatpush.msra.mxu0 0.0
  %1379 = vmatpush.msra.mxu0 0.0
  %1380 = vmatpush.msra.mxu0 0.0
  %1381 = vmatpush.msra.mxu0 0.0
  %1382 = vmatpush.msra.mxu0 0.0
  %1383 = vmatpush.msra.mxu0 %v1327
  %1384 = vmatpush.msra.mxu0 %v1325
  %1385 = vmatmul.f32.gmra.mxu0 %v1347
  %v1386 = vpop.f32.mrf.mxu0
  %v1387 = vadd.f32 0.0, %v1386
  %1388 = vdwg.mxu0
  %v1390 = vsel %vm592, %v1344, 0
  %1392 = vmatpush.msra.mxu0 0.0
  %1393 = vmatpush.msra.mxu0 0.0
  %1394 = vmatpush.msra.mxu0 0.0
  %1395 = vmatpush.msra.mxu0 0.0
  %1396 = vmatpush.msra.mxu0 0.0
  %1397 = vmatpush.msra.mxu0 0.0
  %1398 = vmatpush.msra.mxu0 0.0
  %1399 = vmatpush.msra.mxu0 0.0
  %1400 = vmatpush.msra.mxu0 0.0
  %1401 = vmatpush.msra.mxu0 0.0
  %1402 = vmatpush.msra.mxu0 0.0
  %1403 = vmatpush.msra.mxu0 0.0
  %1404 = vmatpush.msra.mxu0 0.0
  %1405 = vmatpush.msra.mxu0 0.0
  %1406 = vmatpush.msra.mxu0 %v1310
  %1407 = vmatpush.msra.mxu0 %v1308
  %1408 = vmatmul.f32.gmra.mxu0 %v1390
  %v1409 = vpop.f32.mrf.mxu0
  %v1410 = vadd.f32 %v1367, %v1409
  %1411 = vdwg.mxu0
  %1412 = vmatpush.msra.mxu0 0.0
  %1413 = vmatpush.msra.mxu0 0.0
  %1414 = vmatpush.msra.mxu0 0.0
  %1415 = vmatpush.msra.mxu0 0.0
  %1416 = vmatpush.msra.mxu0 0.0
  %1417 = vmatpush.msra.mxu0 0.0
  %1418 = vmatpush.msra.mxu0 0.0
  %1419 = vmatpush.msra.mxu0 0.0
  %1420 = vmatpush.msra.mxu0 0.0
  %1421 = vmatpush.msra.mxu0 0.0
  %1422 = vmatpush.msra.mxu0 0.0
  %1423 = vmatpush.msra.mxu0 0.0
  %1424 = vmatpush.msra.mxu0 0.0
  %1425 = vmatpush.msra.mxu0 0.0
  %1426 = vmatpush.msra.mxu0 %v1311
  %1427 = vmatpush.msra.mxu0 %v1309
  %1428 = vmatmul.f32.gmra.mxu0 %v1390
  %v1429 = vpop.f32.mrf.mxu0
  %v1430 = vadd.f32 %v1387, %v1429
  %1431 = vdwg.mxu0
  %v1432 = vld [vmem:[%s1 + $0xe8] sm:$0xff]
  %v1434 = vsel %vm592, %v1432, 0
  %1436 = vmatpush.msra.mxu0 0.0
  %1437 = vmatpush.msra.mxu0 0.0
  %1438 = vmatpush.msra.mxu0 0.0
  %1439 = vmatpush.msra.mxu0 0.0
  %1440 = vmatpush.msra.mxu0 0.0
  %1441 = vmatpush.msra.mxu0 0.0
  %1442 = vmatpush.msra.mxu0 0.0
  %1443 = vmatpush.msra.mxu0 0.0
  %1444 = vmatpush.msra.mxu0 0.0
  %1445 = vmatpush.msra.mxu0 0.0
  %1446 = vmatpush.msra.mxu0 0.0
  %1447 = vmatpush.msra.mxu0 0.0
  %1448 = vmatpush.msra.mxu0 0.0
  %1449 = vmatpush.msra.mxu0 0.0
  %1450 = vmatpush.msra.mxu0 %v1342
  %1451 = vmatpush.msra.mxu0 %v1340
  %1452 = vmatmul.f32.gmra.mxu0 %v1434
  %v1453 = vpop.f32.mrf.mxu0
  %v1454 = vadd.f32 0.0, %v1453
  %1455 = vdwg.mxu0
  %1456 = vmatpush.msra.mxu0 0.0
  %1457 = vmatpush.msra.mxu0 0.0
  %1458 = vmatpush.msra.mxu0 0.0
  %1459 = vmatpush.msra.mxu0 0.0
  %1460 = vmatpush.msra.mxu0 0.0
  %1461 = vmatpush.msra.mxu0 0.0
  %1462 = vmatpush.msra.mxu0 0.0
  %1463 = vmatpush.msra.mxu0 0.0
  %1464 = vmatpush.msra.mxu0 0.0
  %1465 = vmatpush.msra.mxu0 0.0
  %1466 = vmatpush.msra.mxu0 0.0
  %1467 = vmatpush.msra.mxu0 0.0
  %1468 = vmatpush.msra.mxu0 0.0
  %1469 = vmatpush.msra.mxu0 0.0
  %1470 = vmatpush.msra.mxu0 %v1343
  %1471 = vmatpush.msra.mxu0 %v1341
  %1472 = vmatmul.f32.gmra.mxu0 %v1434
  %v1473 = vpop.f32.mrf.mxu0
  %v1474 = vadd.f32 0.0, %v1473
  %1475 = vdwg.mxu0
  %v1476 = vadd.f32 %v1410, %v1454
  %v1477 = vadd.f32 %v1430, %v1474
  %v1478 = vmul.f32 %v1476, %v57
  %v1479 = vmul.f32 %v1477, %v58
  %v1480 = vadd.f32 %v1478, %v1479
  %1481 = vadd.xlane.f32.xlu0 %v1480
  %v1482 = vpop.xlane.xlu0 %1481
  %v1483 = vmul.f32 %v1482, 0.03125
  %v1484 = vsub.f32 %v1478, %v1483
  %v1485 = vsub.f32 %v1479, %v1483
  %v1486 = vmul.f32 %v1484, %v57
  %v1487 = vmul.f32 %v1485, %v58
  %v1488 = vmul.f32 %v1486, %v1486
  %v1489 = vmul.f32 %v1487, %v1487
  %v1490 = vadd.f32 %v1488, %v1489
  %1491 = vadd.xlane.f32.xlu0 %v1490
  %v1492 = vpop.xlane.xlu0 %1491
  %v1493 = vmul.f32 %v1492, 0.03125
  %v1494 = vadd.f32 %v1493, 1e-05
  %v1495 = vrsqrt.pop %v1494
  %v1496 = vmul.f32 %v1495, %v1494
  %v1497 = vmul.f32 %v1496, %v1495
  %v1498 = vmul.f32 0.5, %v1497
  %v1499 = vsub.f32 1.5, %v1498
  %v1500 = vmul.f32 %v1495, %v1499
  %vm1501 = vweird.f32 %v1494
  %vm1502 = vweird.f32 %v1495
  %vm1503 = vmor %vm1501, %vm1502
  %v1504 = vsel %vm1503, %v1495, %v1500
  %v1505 = vmul.f32 %v1504, %v234
  %1507 = vset.pattern.permute.xlu0 8
  %1508 = vperm.xlu0 %1507, %v1505
  %v1509 = vpop.permute.xlu0 %1508
  %v1511 = vmul.f32 %v1486, %v1509
  %v1512 = vmul.f32 %v1487, %v1509
  %1513 = vset.pattern.permute.xlu0 9
  %1514 = vperm.xlu0 %1513, %v234
  %v1515 = vpop.permute.xlu0 %1514
  %v1517 = vadd.f32 %v1511, %v1515
  %v1518 = vadd.f32 %v1512, %v1515
  %v1519 = vmax.f32 %v1517, 0.0
  %v1520 = vmax.f32 %v1518, 0.0
  %1521 = vrot.lane.b32.xlu0 %v1519, 1
  %v1522 = vpop.permute.xlu0 %1521
  %1523 = vrot.lane.b32.xlu0 %v1520, 1
  %v1524 = vpop.permute.xlu0 %1523
  %v1525 = vsel %vm66, %v1522, %v1524
  %v1526 = vsel %vm66, %v1524, %v1522
  %v1527 = vmul.f32 %v1526, %v45
  %v1528 = vmul.f32 %v1525, %v46
  %1529 = vrot.lane.b32.xlu0 %v1519, 127
  %v1530 = vpop.permute.xlu0 %1529
  %1531 = vrot.lane.b32.xlu0 %v1520, 127
  %v1532 = vpop.permute.xlu0 %1531
  %v1533 = vsel %vm75, %v1530, %v1532
  %v1534 = vsel %vm75, %v1532, %v1530
  %v1535 = vmul.f32 %v1533, %v51
  %v1536 = vmul.f32 %v1534, %v52
  %v1537 = vld [vmem:[%s1 + $0xf8] sm:$0xff]
  %v1538 = vld [vmem:[%s1 + $0xf0] sm:$0xff]
  %v1540 = vsel %vm299, %v1538, 0
  %1542 = vmatpush.msra.mxu0 0.0
  %1543 = vmatpush.msra.mxu0 0.0
  %1544 = vmatpush.msra.mxu0 0.0
  %1545 = vmatpush.msra.mxu0 0.0
  %1546 = vmatpush.msra.mxu0 0.0
  %1547 = vmatpush.msra.mxu0 0.0
  %1548 = vmatpush.msra.mxu0 0.0
  %1549 = vmatpush.msra.mxu0 0.0
  %1550 = vmatpush.msra.mxu0 0.0
  %1551 = vmatpush.msra.mxu0 0.0
  %1552 = vmatpush.msra.mxu0 0.0
  %1553 = vmatpush.msra.mxu0 0.0
  %1554 = vmatpush.msra.mxu0 0.0
  %1555 = vmatpush.msra.mxu0 0.0
  %1556 = vmatpush.msra.mxu0 0.0
  %1557 = vmatpush.msra.mxu0 %v1527
  %1558 = vmatmul.f32.gmra.mxu0 %v1540
  %v1559 = vpop.f32.mrf.mxu0
  %v1560 = vadd.f32 0.0, %v1559
  %1561 = vdwg.mxu0
  %1562 = vmatpush.msra.mxu0 0.0
  %1563 = vmatpush.msra.mxu0 0.0
  %1564 = vmatpush.msra.mxu0 0.0
  %1565 = vmatpush.msra.mxu0 0.0
  %1566 = vmatpush.msra.mxu0 0.0
  %1567 = vmatpush.msra.mxu0 0.0
  %1568 = vmatpush.msra.mxu0 0.0
  %1569 = vmatpush.msra.mxu0 0.0
  %1570 = vmatpush.msra.mxu0 0.0
  %1571 = vmatpush.msra.mxu0 0.0
  %1572 = vmatpush.msra.mxu0 0.0
  %1573 = vmatpush.msra.mxu0 0.0
  %1574 = vmatpush.msra.mxu0 0.0
  %1575 = vmatpush.msra.mxu0 0.0
  %1576 = vmatpush.msra.mxu0 0.0
  %1577 = vmatpush.msra.mxu0 %v1528
  %1578 = vmatmul.f32.gmra.mxu0 %v1540
  %v1579 = vpop.f32.mrf.mxu0
  %v1580 = vadd.f32 0.0, %v1579
  %1581 = vdwg.mxu0
  %v1583 = vsel %vm299, %v1537, 0
  %1585 = vmatpush.msra.mxu0 0.0
  %1586 = vmatpush.msra.mxu0 0.0
  %1587 = vmatpush.msra.mxu0 0.0
  %1588 = vmatpush.msra.mxu0 0.0
  %1589 = vmatpush.msra.mxu0 0.0
  %1590 = vmatpush.msra.mxu0 0.0
  %1591 = vmatpush.msra.mxu0 0.0
  %1592 = vmatpush.msra.mxu0 0.0
  %1593 = vmatpush.msra.mxu0 0.0
  %1594 = vmatpush.msra.mxu0 0.0
  %1595 = vmatpush.msra.mxu0 0.0
  %1596 = vmatpush.msra.mxu0 0.0
  %1597 = vmatpush.msra.mxu0 0.0
  %1598 = vmatpush.msra.mxu0 0.0
  %1599 = vmatpush.msra.mxu0 0.0
  %1600 = vmatpush.msra.mxu0 %v1519
  %1601 = vmatmul.f32.gmra.mxu0 %v1583
  %v1602 = vpop.f32.mrf.mxu0
  %v1603 = vadd.f32 %v1560, %v1602
  %1604 = vdwg.mxu0
  %1605 = vmatpush.msra.mxu0 0.0
  %1606 = vmatpush.msra.mxu0 0.0
  %1607 = vmatpush.msra.mxu0 0.0
  %1608 = vmatpush.msra.mxu0 0.0
  %1609 = vmatpush.msra.mxu0 0.0
  %1610 = vmatpush.msra.mxu0 0.0
  %1611 = vmatpush.msra.mxu0 0.0
  %1612 = vmatpush.msra.mxu0 0.0
  %1613 = vmatpush.msra.mxu0 0.0
  %1614 = vmatpush.msra.mxu0 0.0
  %1615 = vmatpush.msra.mxu0 0.0
  %1616 = vmatpush.msra.mxu0 0.0
  %1617 = vmatpush.msra.mxu0 0.0
  %1618 = vmatpush.msra.mxu0 0.0
  %1619 = vmatpush.msra.mxu0 0.0
  %1620 = vmatpush.msra.mxu0 %v1520
  %1621 = vmatmul.f32.gmra.mxu0 %v1583
  %v1622 = vpop.f32.mrf.mxu0
  %v1623 = vadd.f32 %v1580, %v1622
  %1624 = vdwg.mxu0
  %v1625 = vld [vmem:[%s1 + $0x100] sm:$0xff]
  %v1627 = vsel %vm299, %v1625, 0
  %1629 = vmatpush.msra.mxu0 0.0
  %1630 = vmatpush.msra.mxu0 0.0
  %1631 = vmatpush.msra.mxu0 0.0
  %1632 = vmatpush.msra.mxu0 0.0
  %1633 = vmatpush.msra.mxu0 0.0
  %1634 = vmatpush.msra.mxu0 0.0
  %1635 = vmatpush.msra.mxu0 0.0
  %1636 = vmatpush.msra.mxu0 0.0
  %1637 = vmatpush.msra.mxu0 0.0
  %1638 = vmatpush.msra.mxu0 0.0
  %1639 = vmatpush.msra.mxu0 0.0
  %1640 = vmatpush.msra.mxu0 0.0
  %1641 = vmatpush.msra.mxu0 0.0
  %1642 = vmatpush.msra.mxu0 0.0
  %1643 = vmatpush.msra.mxu0 0.0
  %1644 = vmatpush.msra.mxu0 %v1535
  %1645 = vmatmul.f32.gmra.mxu0 %v1627
  %v1646 = vpop.f32.mrf.mxu0
  %v1647 = vadd.f32 0.0, %v1646
  %1648 = vdwg.mxu0
  %1649 = vmatpush.msra.mxu0 0.0
  %1650 = vmatpush.msra.mxu0 0.0
  %1651 = vmatpush.msra.mxu0 0.0
  %1652 = vmatpush.msra.mxu0 0.0
  %1653 = vmatpush.msra.mxu0 0.0
  %1654 = vmatpush.msra.mxu0 0.0
  %1655 = vmatpush.msra.mxu0 0.0
  %1656 = vmatpush.msra.mxu0 0.0
  %1657 = vmatpush.msra.mxu0 0.0
  %1658 = vmatpush.msra.mxu0 0.0
  %1659 = vmatpush.msra.mxu0 0.0
  %1660 = vmatpush.msra.mxu0 0.0
  %1661 = vmatpush.msra.mxu0 0.0
  %1662 = vmatpush.msra.mxu0 0.0
  %1663 = vmatpush.msra.mxu0 0.0
  %1664 = vmatpush.msra.mxu0 %v1536
  %1665 = vmatmul.f32.gmra.mxu0 %v1627
  %v1666 = vpop.f32.mrf.mxu0
  %v1667 = vadd.f32 0.0, %v1666
  %1668 = vdwg.mxu0
  %v1669 = vadd.f32 %v1603, %v1647
  %v1670 = vadd.f32 %v1623, %v1667
  %1671 = vset.pattern.permute.xlu0 10
  %1672 = vperm.xlu0 %1671, %v234
  %v1673 = vpop.permute.xlu0 %1672
  %v1675 = vadd.f32 %v1669, %v1673
  %v1676 = vadd.f32 %v1670, %v1673
  %v1677 = vmul.f32 %v1675, 0.5
  %v1678 = vmul.f32 %v1676, 0.5
  %v1679 = vtanh.pop %v1677
  %v1680 = vtanh.pop %v1678
  %v1681 = vadd.f32 %v1679, 1.0
  %v1682 = vadd.f32 %v1680, 1.0
  %v1683 = vmul.f32 %v1681, 0.5
  %v1684 = vmul.f32 %v1682, 0.5
  %1685 = vst [vmem:[%s3] sm:$0xff] %v1683
  %s1686 = scalar_lea.vmem %s3, 8
  %1687 = vst [vmem:[%s1686] sm:$0xff] %v1684
  // Predicated region
  $region14: #{audio_encoder_decoder.1} parent=0 // pred_check
    _
  $region15: #{audio_encoder_decoder.1} parent=0 // pred_check_branch
    %1689 = sbr.rel (0) target = $region17
  $region16: #{audio_encoder_decoder.1} parent=0 // pred_region
    _
  $region17: #{audio_encoder_decoder.1} parent=0 // pred_fallthru
    _
  // Predicated region
  $region18: #{audio_encoder_decoder.1} parent=0 // pred_check
    _
  $region19: #{audio_encoder_decoder.1} parent=0 // pred_check_branch
    %1691 = sbr.rel (0) target = $region21
  $region20: #{audio_encoder_decoder.1} parent=0 // pred_region
    _
  $region21: #{audio_encoder_decoder.1} parent=0 // pred_fallthru
    _

</llo_original>
